<compile_context>
chip_gen: v7x
topology: tpu7x:2x2x1
jax: 0.10.0
libtpu: 0.0.40
codegen_flags: <defaults>
</compile_context>

<pallas_src>
import numpy as np
import jax
import jax.numpy as jnp
from jax.experimental import pallas as pl
from jax.experimental.pallas import tpu as pltpu

# ----------------------------- configuration --------------------------------
# Mirrors cfg.RPN defaults (FP_MLPS[0][-1], CLS_FC=[C], REG_FC=[C], USE_BN=True,
# DP_RATIO>=0, LOSS_CLS='SigmoidFocalLoss'), at small synthetic sizes.
C_FEAT = 64          # backbone feature channels (cfg.RPN.FP_MLPS[0][-1])
C_CLS_FC = 64        # cfg.RPN.CLS_FC[0]
C_REG_FC = 64        # cfg.RPN.REG_FC[0]
REG_CH = 9           # reg_channel
HEAD_W = 16          # padded lane width of merged cls(1)+reg(9) head output
BN_EPS = 1e-5
TILE_N = 512         # points per grid step (mem-bound roofline sweet spot)


# ------------------------------ Pallas kernel --------------------------------
def rpn_kernel(pts_ref,
               wb_ref, bb_ref,          # backbone stub (3 -> C_FEAT)
               w1_ref, b1_ref,          # fused first layers of cls+reg heads
               w2_ref, b2_ref,          # fused (block-diag) final convs
               feat_ref, head_ref):
    # pts tile: (1, tile_n, 3) fp32
    x = pts_ref[0]                                        # (tn, 3)
    wb = wb_ref[...]                                      # (3, C_FEAT)

    # ---- backbone stub: pointwise layer done on the VPU (K=3 would waste an
    # MXU pass); TODO(synk): real PointNet++ backbone not reproduced. ---------
    feat = (x[:, 0:1] * wb[0:1, :]
            + x[:, 1:2] * wb[1:2, :]
            + x[:, 2:3] * wb[2:3, :])
    feat = jnp.maximum(feat + bb_ref[...], 0.0)           # (tn, C_FEAT)

    # backbone_features emitted already transposed (C_FEAT, tn): lane-dense
    # stores, no wrapper-side transpose / extra HBM pass.
    feat_ref[0] = feat.T.astype(feat_ref.dtype)

    # ---- fused cls/reg heads -------------------------------------------------
    # First Conv1d of each head (BN folded, ReLU): one (tn,64)@(64,128) dot.
    # Dropout (DP_RATIO) is identity at eval.
    hg = jnp.dot(feat, w1_ref[...], preferred_element_type=jnp.float32)
    hg = jnp.maximum(hg + b1_ref[...], 0.0)               # (tn, 128)

    # Final Conv1d of each head via block-diagonal (128,16) weight:
    #   lanes 0..63 of hg feed output lane 0 (cls), lanes 64..127 feed
    #   output lanes 1..9 (reg); lanes 10..15 are padding.
    head = jnp.dot(hg, w2_ref[...], preferred_element_type=jnp.float32)
    head_ref[0] = (head + b2_ref[...]).astype(head_ref.dtype)   # (tn, 16)


# ------------------------------ wrapper --------------------------------------
def rpn_forward(pts_input, params):
    """pts_input: (B, N, 3) float32.  Returns dict like RPN.forward."""
    B, N, _ = pts_input.shape
    tile_n = min(TILE_N, N)
    assert N % tile_n == 0 and tile_n % 128 == 0

    (wb, bb, wc1, bc1, wc2, bc2, wr1, br1, wr2, br2) = params

    # ---- fuse the two head stacks (done once at trace time, tiny arrays) ----
    w1 = jnp.concatenate([wc1, wr1], axis=1)              # (C_FEAT, 128)
    b1 = jnp.concatenate([bc1, br1], axis=1)              # (1, 128)
    w2 = jnp.zeros((C_CLS_FC + C_REG_FC, HEAD_W), jnp.float32)
    w2 = w2.at[:C_CLS_FC, 0:1].set(wc2)                   # cls -> lane 0
    w2 = w2.at[C_CLS_FC:, 1:1 + REG_CH].set(wr2)          # reg -> lanes 1..9
    b2 = jnp.zeros((1, HEAD_W), jnp.float32)
    b2 = b2.at[0, 0].set(bc2[0, 0])
    b2 = b2.at[0, 1:1 + REG_CH].set(br2[0, :])

    def w_spec(shape):
        return pl.BlockSpec(shape, lambda b, n: (0,) * len(shape))

    grid = (B, N // tile_n)

    feat_t, head = pl.pallas_call(
        rpn_kernel,
        out_shape=(
            jax.ShapeDtypeStruct((B, C_FEAT, N), jnp.float32),   # transposed
            jax.ShapeDtypeStruct((B, N, HEAD_W), jnp.float32),   # merged heads
        ),
        grid_spec=pltpu.PrefetchScalarGridSpec(
            num_scalar_prefetch=0,
            grid=grid,
            in_specs=[
                pl.BlockSpec((1, tile_n, 3), lambda b, n: (b, n, 0)),
                w_spec(wb.shape), w_spec(bb.shape),
                w_spec(w1.shape), w_spec(b1.shape),
                w_spec(w2.shape), w_spec(b2.shape),
            ],
            out_specs=[
                pl.BlockSpec((1, C_FEAT, tile_n), lambda b, n: (b, 0, n)),
                pl.BlockSpec((1, tile_n, HEAD_W), lambda b, n: (b, n, 0)),
            ],
        ),
        compiler_params=pltpu.CompilerParams(
            dimension_semantics=("parallel", "parallel"),
            vmem_limit_bytes=32 * 1024 * 1024),
    )(pts_input, wb, bb, w1, b1, w2, b2)

    # PyTorch conventions: backbone_features is NCW (B, C, N) — emitted
    # directly by the kernel; rpn_cls / rpn_reg are post-.transpose(1, 2),
    # i.e. (B, N, 1) and (B, N, 9) — cheap lane slices of the merged output.
    ret = {
        'rpn_cls': head[..., 0:1],
        'rpn_reg': head[..., 1:1 + REG_CH],
        'backbone_xyz': pts_input,            # (B, N, 3)
        'backbone_features': feat_t,          # (B, C, N), no wrapper transpose
    }
    return ret


# --------------------------- parameter construction --------------------------
def make_params(key):
    """Deterministic init mirroring RPN.__init__ / init_weights (eval mode).

    Conv1d weights of shape (out, in, 1) are stored transposed as (in, out) so
    the kernel can compute  x @ W.  BatchNorm (USE_BN) is folded into the first
    conv of each head (eval-mode running stats: mean=0, var=1, gamma=1,
    beta=0), with SEPARATE scales for the cls and reg heads.  Dropout
    (DP_RATIO) is identity at eval.
    """
    ks = jax.random.split(key, 8)

    def conv_w(k, c_in, c_out, std=None):
        if std is None:  # kaiming-ish default
            std = 1.0 / np.sqrt(c_in)
        return (std * jax.random.normal(k, (c_in, c_out))).astype(jnp.float32)

    # backbone stub (deterministic placeholder for cfg.RPN.BACKBONE)
    wb = conv_w(ks[0], 3, C_FEAT)
    bb = jnp.zeros((1, C_FEAT), jnp.float32)

    # --- cls head ---
    wc1 = conv_w(ks[1], C_FEAT, C_CLS_FC)
    bc1 = (0.01 * jax.random.normal(ks[2], (1, C_CLS_FC))).astype(jnp.float32)
    wc2 = conv_w(ks[3], C_CLS_FC, 1)
    # init_weights: SigmoidFocalLoss -> bias of final cls conv = -log((1-pi)/pi)
    pi = 0.01
    bc2 = jnp.full((1, 1), -np.log((1.0 - pi) / pi), jnp.float32)

    # --- reg head ---
    wr1 = conv_w(ks[4], C_FEAT, C_REG_FC)
    br1 = (0.01 * jax.random.normal(ks[5], (1, C_REG_FC))).astype(jnp.float32)
    # init_weights: final reg conv weight ~ N(0, 0.001)
    wr2 = conv_w(ks[6], C_REG_FC, REG_CH, std=0.001)
    br2 = jnp.zeros((1, REG_CH), jnp.float32)

    # Fold eval-mode BatchNorm1d into the first conv of each head
    # (independent scales per head — no C_CLS_FC == C_REG_FC assumption).
    def bn_fold(w, b, c):
        gamma = jnp.ones((c,), jnp.float32)
        beta = jnp.zeros((c,), jnp.float32)
        r_mean = jnp.zeros((c,), jnp.float32)
        r_var = jnp.ones((c,), jnp.float32)
        scale = gamma / jnp.sqrt(r_var + BN_EPS)
        return w * scale[None, :], (b - r_mean[None, :]) * scale[None, :] + beta[None, :]

    wc1, bc1 = bn_fold(wc1, bc1, C_CLS_FC)
    wr1, br1 = bn_fold(wr1, br1, C_REG_FC)
    # TODO(synk): training-mode BatchNorm batch stats + Dropout masks not
    #             modeled; this reproduces eval-mode semantics.

    return (wb, bb, wc1, bc1, wc2, bc2, wr1, br1, wr2, br2)


# -------------------------------- main ----------------------------------------
if __name__ == "__main__":
    key = jax.random.PRNGKey(0)
    k_pts, k_par = jax.random.split(key)

    B, N = 2, 1024
    pts_input = jax.random.normal(k_pts, (B, N, 3), dtype=jnp.float32)
    params = make_params(k_par)

    out = rpn_forward(pts_input, params)
    jax.block_until_ready(out)

    assert out['rpn_cls'].shape == (B, N, 1)
    assert out['rpn_reg'].shape == (B, N, REG_CH)
    assert out['backbone_features'].shape == (B, C_FEAT, N)
    assert out['backbone_xyz'].shape == (B, N, 3)

    # Sanity check against a pure-JAX reference of the same math.
    wb, bb, wc1, bc1, wc2, bc2, wr1, br1, wr2, br2 = params
    feat_ref = jnp.maximum(pts_input @ wb + bb, 0.0)
    cls_ref = jnp.maximum(feat_ref @ wc1 + bc1, 0.0) @ wc2 + bc2
    reg_ref = jnp.maximum(feat_ref @ wr1 + br1, 0.0) @ wr2 + br2
    np.testing.assert_allclose(np.asarray(out['rpn_cls']), np.asarray(cls_ref),
                               rtol=1e-5, atol=1e-5)
    np.testing.assert_allclose(np.asarray(out['rpn_reg']), np.asarray(reg_ref),
                               rtol=1e-5, atol=1e-5)
    np.testing.assert_allclose(np.asarray(out['backbone_features']),
                               np.asarray(jnp.transpose(feat_ref, (0, 2, 1))),
                               rtol=1e-5, atol=1e-5)

    print("KERNEL_OK")
</pallas_src>

<mosaic_0001>
module attributes {stable_mosaic.version = 11 : i64} {
  func.func @rpn_kernel(%arg0: i32, %arg1: i32, %arg2: memref<1x512x3xf32, #tpu.memory_space<vmem>>, %arg3: memref<3x64xf32, #tpu.memory_space<vmem>>, %arg4: memref<1x64xf32, #tpu.memory_space<vmem>>, %arg5: memref<64x128xf32, #tpu.memory_space<vmem>>, %arg6: memref<1x128xf32, #tpu.memory_space<vmem>>, %arg7: memref<128x16xf32, #tpu.memory_space<vmem>>, %arg8: memref<1x16xf32, #tpu.memory_space<vmem>>, %arg9: memref<1x64x512xf32, #tpu.memory_space<vmem>>, %arg10: memref<1x512x16xf32, #tpu.memory_space<vmem>>) attributes {dimension_semantics = [#tpu.dimension_semantics<parallel>, #tpu.dimension_semantics<parallel>], iteration_bounds = array<i64: 2, 2>, scalar_prefetch = 0 : i64, scratch_operands = 0 : i64, tpu.core_type = #tpu.core_type<tc>, window_params = [{transform_indices = @transform_0, window_bounds = array<i64: 1, 512, 3>}, {pipeline_mode = #tpu.pipeline_mode<synchronous>, transform_indices = @transform_1, window_bounds = array<i64: 3, 64>}, {pipeline_mode = #tpu.pipeline_mode<synchronous>, transform_indices = @transform_2, window_bounds = array<i64: 1, 64>}, {pipeline_mode = #tpu.pipeline_mode<synchronous>, transform_indices = @transform_3, window_bounds = array<i64: 64, 128>}, {pipeline_mode = #tpu.pipeline_mode<synchronous>, transform_indices = @transform_4, window_bounds = array<i64: 1, 128>}, {pipeline_mode = #tpu.pipeline_mode<synchronous>, transform_indices = @transform_5, window_bounds = array<i64: 128, 16>}, {pipeline_mode = #tpu.pipeline_mode<synchronous>, transform_indices = @transform_6, window_bounds = array<i64: 1, 16>}, {transform_indices = @transform_7, window_bounds = array<i64: 1, 64, 512>}, {transform_indices = @transform_8, window_bounds = array<i64: 1, 512, 16>}]} {
    %c0 = arith.constant 0 : index
    %c0_0 = arith.constant 0 : index
    %c0_1 = arith.constant 0 : index
    %0 = vector.load %arg2[%c0, %c0_0, %c0_1] : memref<1x512x3xf32, #tpu.memory_space<vmem>>, vector<1x512x3xf32>
    %1 = vector.shape_cast %0 : vector<1x512x3xf32> to vector<512x3xf32>
    %c0_2 = arith.constant 0 : index
    %c0_3 = arith.constant 0 : index
    %2 = vector.load %arg3[%c0_2, %c0_3] : memref<3x64xf32, #tpu.memory_space<vmem>>, vector<3x64xf32>
    %3 = vector.extract_strided_slice %1 {offsets = [0, 0], sizes = [512, 1], strides = [1, 1]} : vector<512x3xf32> to vector<512x1xf32>
    %4 = vector.extract_strided_slice %2 {offsets = [0, 0], sizes = [1, 64], strides = [1, 1]} : vector<3x64xf32> to vector<1x64xf32>
    %5 = vector.broadcast %3 : vector<512x1xf32> to vector<512x64xf32>
    %6 = vector.broadcast %4 : vector<1x64xf32> to vector<512x64xf32>
    %7 = arith.mulf %5, %6 : vector<512x64xf32>
    %8 = vector.extract_strided_slice %1 {offsets = [0, 1], sizes = [512, 1], strides = [1, 1]} : vector<512x3xf32> to vector<512x1xf32>
    %9 = vector.extract_strided_slice %2 {offsets = [1, 0], sizes = [1, 64], strides = [1, 1]} : vector<3x64xf32> to vector<1x64xf32>
    %10 = vector.broadcast %8 : vector<512x1xf32> to vector<512x64xf32>
    %11 = vector.broadcast %9 : vector<1x64xf32> to vector<512x64xf32>
    %12 = arith.mulf %10, %11 : vector<512x64xf32>
    %13 = arith.addf %7, %12 : vector<512x64xf32>
    %14 = vector.extract_strided_slice %1 {offsets = [0, 2], sizes = [512, 1], strides = [1, 1]} : vector<512x3xf32> to vector<512x1xf32>
    %15 = vector.extract_strided_slice %2 {offsets = [2, 0], sizes = [1, 64], strides = [1, 1]} : vector<3x64xf32> to vector<1x64xf32>
    %16 = vector.broadcast %14 : vector<512x1xf32> to vector<512x64xf32>
    %17 = vector.broadcast %15 : vector<1x64xf32> to vector<512x64xf32>
    %18 = arith.mulf %16, %17 : vector<512x64xf32>
    %19 = arith.addf %13, %18 : vector<512x64xf32>
    %c0_4 = arith.constant 0 : index
    %c0_5 = arith.constant 0 : index
    %20 = vector.load %arg4[%c0_4, %c0_5] : memref<1x64xf32, #tpu.memory_space<vmem>>, vector<1x64xf32>
    %21 = vector.broadcast %20 : vector<1x64xf32> to vector<512x64xf32>
    %22 = arith.addf %19, %21 : vector<512x64xf32>
    %cst = arith.constant 0.000000e+00 : f32
    %23 = vector.broadcast %cst : f32 to vector<512x64xf32>
    %24 = arith.maximumf %22, %23 : vector<512x64xf32>
    %25 = tpu.transpose %24, [1, 0] : vector<512x64xf32> -> vector<64x512xf32>
    %c0_6 = arith.constant 0 : index
    %c0_7 = arith.constant 0 : index
    %c0_8 = arith.constant 0 : index
    %26 = vector.load %arg9[%c0_6, %c0_7, %c0_8] : memref<1x64x512xf32, #tpu.memory_space<vmem>>, vector<1x64x512xf32>
    %27 = vector.shape_cast %26 : vector<1x64x512xf32> to vector<64x512xf32>
    %28 = vector.shape_cast %25 : vector<64x512xf32> to vector<1x64x512xf32>
    tpu.vector_store %arg9[%c0_6, %c0_7, %c0_8], %28 {strides = array<i32>} : memref<1x64x512xf32, #tpu.memory_space<vmem>>, vector<1x64x512xf32>,
    %c0_9 = arith.constant 0 : index
    %c0_10 = arith.constant 0 : index
    %29 = vector.load %arg5[%c0_9, %c0_10] : memref<64x128xf32, #tpu.memory_space<vmem>>, vector<64x128xf32>
    %cst_11 = arith.constant dense<0.000000e+00> : vector<512x128xf32>
    %30 = tpu.matmul %24, %29, %cst_11 {dimension_numbers = #tpu.dot_dimension_numbers<[1], [0], [0], [1], [0, 0, 1, 1], [], []>} : vector<512x64xf32>, vector<64x128xf32>, vector<512x128xf32> -> vector<512x128xf32>
    %c0_12 = arith.constant 0 : index
    %c0_13 = arith.constant 0 : index
    %31 = vector.load %arg6[%c0_12, %c0_13] : memref<1x128xf32, #tpu.memory_space<vmem>>, vector<1x128xf32>
    %32 = vector.broadcast %31 : vector<1x128xf32> to vector<512x128xf32>
    %33 = arith.addf %30, %32 : vector<512x128xf32>
    %cst_14 = arith.constant 0.000000e+00 : f32
    %34 = vector.broadcast %cst_14 : f32 to vector<512x128xf32>
    %35 = arith.maximumf %33, %34 : vector<512x128xf32>
    %c0_15 = arith.constant 0 : index
    %c0_16 = arith.constant 0 : index
    %36 = vector.load %arg7[%c0_15, %c0_16] : memref<128x16xf32, #tpu.memory_space<vmem>>, vector<128x16xf32>
    %cst_17 = arith.constant dense<0.000000e+00> : vector<512x16xf32>
    %37 = tpu.matmul %35, %36, %cst_17 {dimension_numbers = #tpu.dot_dimension_numbers<[1], [0], [0], [1], [0, 0, 1, 1], [], []>} : vector<512x128xf32>, vector<128x16xf32>, vector<512x16xf32> -> vector<512x16xf32>
    %c0_18 = arith.constant 0 : index
    %c0_19 = arith.constant 0 : index
    %38 = vector.load %arg8[%c0_18, %c0_19] : memref<1x16xf32, #tpu.memory_space<vmem>>, vector<1x16xf32>
    %39 = vector.broadcast %38 : vector<1x16xf32> to vector<512x16xf32>
    %40 = arith.addf %37, %39 : vector<512x16xf32>
    %c0_20 = arith.constant 0 : index
    %c0_21 = arith.constant 0 : index
    %c0_22 = arith.constant 0 : index
    %41 = vector.load %arg10[%c0_20, %c0_21, %c0_22] : memref<1x512x16xf32, #tpu.memory_space<vmem>>, vector<1x512x16xf32>
    %42 = vector.shape_cast %41 : vector<1x512x16xf32> to vector<512x16xf32>
    %43 = vector.shape_cast %40 : vector<512x16xf32> to vector<1x512x16xf32>
    tpu.vector_store %arg10[%c0_20, %c0_21, %c0_22], %43 {strides = array<i32>} : memref<1x512x16xf32, #tpu.memory_space<vmem>>, vector<1x512x16xf32>,
    return
  }
  func.func @transform_0(%arg0: i32, %arg1: i32) -> (i32, i32, i32) {
    %c0_i32 = arith.constant 0 : i32
    %c0_i32_0 = arith.constant 0 : i32
    return %arg0, %arg1, %c0_i32 : i32, i32, i32
  }
  func.func @transform_1(%arg0: i32, %arg1: i32) -> (i32, i32) {
    %c0_i32 = arith.constant 0 : i32
    %c0_i32_0 = arith.constant 0 : i32
    %c0_i32_1 = arith.constant 0 : i32
    return %c0_i32, %c0_i32_0 : i32, i32
  }
  func.func @transform_2(%arg0: i32, %arg1: i32) -> (i32, i32) {
    %c0_i32 = arith.constant 0 : i32
    %c0_i32_0 = arith.constant 0 : i32
    %c0_i32_1 = arith.constant 0 : i32
    return %c0_i32, %c0_i32_0 : i32, i32
  }
  func.func @transform_3(%arg0: i32, %arg1: i32) -> (i32, i32) {
    %c0_i32 = arith.constant 0 : i32
    %c0_i32_0 = arith.constant 0 : i32
    %c0_i32_1 = arith.constant 0 : i32
    return %c0_i32, %c0_i32_0 : i32, i32
  }
  func.func @transform_4(%arg0: i32, %arg1: i32) -> (i32, i32) {
    %c0_i32 = arith.constant 0 : i32
    %c0_i32_0 = arith.constant 0 : i32
    %c0_i32_1 = arith.constant 0 : i32
    return %c0_i32, %c0_i32_0 : i32, i32
  }
  func.func @transform_5(%arg0: i32, %arg1: i32) -> (i32, i32) {
    %c0_i32 = arith.constant 0 : i32
    %c0_i32_0 = arith.constant 0 : i32
    %c0_i32_1 = arith.constant 0 : i32
    return %c0_i32, %c0_i32_0 : i32, i32
  }
  func.func @transform_6(%arg0: i32, %arg1: i32) -> (i32, i32) {
    %c0_i32 = arith.constant 0 : i32
    %c0_i32_0 = arith.constant 0 : i32
    %c0_i32_1 = arith.constant 0 : i32
    return %c0_i32, %c0_i32_0 : i32, i32
  }
  func.func @transform_7(%arg0: i32, %arg1: i32) -> (i32, i32, i32) {
    %c0_i32 = arith.constant 0 : i32
    %c0_i32_0 = arith.constant 0 : i32
    return %arg0, %c0_i32, %arg1 : i32, i32, i32
  }
  func.func @transform_8(%arg0: i32, %arg1: i32) -> (i32, i32, i32) {
    %c0_i32 = arith.constant 0 : i32
    %c0_i32_0 = arith.constant 0 : i32
    return %arg0, %arg1, %c0_i32 : i32, i32, i32
  }
}

</mosaic_0001>

<llo_original>
// kernel: tpu_custom_call.1
$region0: #{tpu_custom_call.1}
  #allocation0 [shape = 'u32[]', space=smem, size = 0x4, offset = 0x4, fixed_abs, tag = 'smem constant byte address 0x4 - core index']
  #allocation1 [shape = 'u32[144,128]{1,0:T(1,128)}', space=vmem, size = 0x12000, scoped, tag = 'internal scratch']
  %s0 = inlined_call_operand.vmem [shape: f32[2,1024,3], index: 0, kind: input, shape index: {}]
  %s1 = inlined_call_operand.vmem [shape: f32[3,64], index: 1, kind: input, shape index: {}]
  %s2 = inlined_call_operand.vmem [shape: f32[1,64], index: 2, kind: input, shape index: {}]
  %s3 = inlined_call_operand.vmem [shape: f32[64,128], index: 3, kind: input, shape index: {}]
  %s4 = inlined_call_operand.vmem [shape: f32[1,128], index: 4, kind: input, shape index: {}]
  %s5 = inlined_call_operand.vmem [shape: f32[128,16], index: 5, kind: input, shape index: {}]
  %s6 = inlined_call_operand.vmem [shape: f32[1,16], index: 6, kind: input, shape index: {}]
  %s7 = inlined_call_operand.hbm [shape: f32[2,64,1024], index: 7, kind: output, shape index: {0}]
  %s8 = inlined_call_operand.vmem [shape: f32[2,1024,16], index: 8, kind: output, shape index: {1}]
  %9 = xla_tuple %s7, %s8
  %s10 = sld [smem:[#allocation0]]
  $region69: #{tpu_custom_call.1} parent=0
    _
  %s12 = ssub.s32 1, %s10
  %s13 = scalar_select 0, %s12, %s10
  $region1: #{tpu_custom_call.1} parent=0
    #allocation2 [shape = 'u8[262144]{0}', space=vmem, size = 0x40000, scoped, tag = 'output window, operand 0']
    #allocation3 [shape = 's32[2]{0}', space=sflag, size = 0x8, scoped, tag = 'scoped memory for tpu_custom_call.1']
    %14 = vsyncpa [#allocation3], 0
    %s15 = scalar_lea.sflag [#allocation3], 1
    %16 = vsyncpa %s15, 0
    loop: start=0, step=1, limit=6
    $region2: #{tpu_custom_call.1} parent=1 // loop_pre_header
      _
    $region3: #{tpu_custom_call.1} parent=1 // loop_header
      %s18 = sphi 0, %s22
      %p19 = scmp.ge.s32.totalorder %s18, 6
      %s25 = sphi 0, %s37
      %s26 = sphi 0, %s33
      %s27 = sphi 0, %s25
      %s28 = sphi 0, %s26
      %s29 = sphi 0, %s27
      %s30 = sphi 0, %s28
      %s42 = sphi 0, %s44
      %s45 = sphi 0, %s42
      %s46 = sphi 0, %s45
      %s62 = sphi 0, %s46
      %s66 = sphi 0, %s66
      %s68 = sphi 0, %s66
      %s69 = sphi 0, %s68
      %s83 = sphi 0, %s69
      %s87 = sphi 0, %s87
      %s89 = sphi 0, %s87
      %s90 = sphi 0, %s89
      %s104 = sphi 0, %s90
      %s108 = sphi 0, %s108
      %s110 = sphi 0, %s108
      %s111 = sphi 0, %s110
      %s125 = sphi 0, %s111
      %s129 = sphi 0, %s129
      %s131 = sphi 0, %s129
      %s132 = sphi 0, %s131
      %s146 = sphi 0, %s132
      %s150 = sphi 0, %s150
      %s152 = sphi 0, %s150
      %s153 = sphi 0, %s152
      %s167 = sphi 0, %s153
      %s171 = sphi 0, %s171
      %s173 = sphi 0, %s171
      %s174 = sphi 0, %s173
      %s188 = sphi 0, %s174
      %s196 = sphi 0, %s198
      %s199 = sphi 0, %s196
      %s200 = sphi 0, %s199
      %s216 = sphi 0, %s200
      %s224 = sphi 0, %s226
      %s227 = sphi 0, %s224
      %s228 = sphi 0, %s227
      %s244 = sphi 0, %s228
    $region4: #{tpu_custom_call.1} parent=1 // loop_header_branch
      %21 = sbr.rel (%p19) target = $region8
    $region5: #{tpu_custom_call.1} parent=1 // loop_body
      %s23 = ssub.s32 %s18, 1
      %s24 = ssub.s32 %s18, 2
      %s31 = sadd.s32 1, %s26
      %p32 = scmp.ge.s32.totalorder %s31, 2
      %s33 = scalar_select %p32, 0, %s31
      %s34 = sadd.s32 1, %s25
      %s35 = scalar_select %p32, %s34, %s25
      %p36 = scmp.ge.s32.totalorder %s35, 2
      %s37 = scalar_select %p36, 0, %s35
      %s38 = ssub.s32 %s25, %s37
      %s39 = ssub.s32 %s26, %s33
      %s40 = sor.u32 %s38, %s39
      %p41 = scmp.eq.s32.totalorder %s40, 0
      %s43 = sadd.s32 %s42, 1
      %s44 = scalar_select %p41, %s42, %s43
      %p47 = pneg %p41
      %p48 = scmp.eq.s32.totalorder %s18, 3
      %p49 = por %p47, %p48
      %p50 = scmp.ne.s32.totalorder %s42, %s45
      %p51 = scmp.eq.s32.totalorder %s18, 0
      %p52 = por %p50, %p51
      %p53 = scmp.ne.s32.totalorder %s42, %s45
      %p54 = scmp.eq.s32.totalorder %s23, 3
      %p55 = por %p53, %p54
      %p56 = scmp.ne.s32.totalorder %s45, %s46
      %p57 = scmp.eq.s32.totalorder %s23, 0
      %p58 = por %p56, %p57
      %p59 = scmp.ne.s32.totalorder %s45, %s46
      %p60 = scmp.eq.s32.totalorder %s24, 3
      %p61 = por %p59, %p60
      %p63 = scmp.ne.s32.totalorder %s46, %s62
      %p64 = scmp.eq.s32.totalorder %s24, 0
      %p65 = por %p63, %p64
      %s67 = sadd.s32 %s66, 1
      %p70 = scmp.eq.s32.totalorder %s18, 3
      %p71 = scmp.ne.s32.totalorder %s66, %s68
      %p72 = scmp.eq.s32.totalorder %s18, 0
      %p73 = por %p71, %p72
      %p74 = scmp.ne.s32.totalorder %s66, %s68
      %p75 = scmp.eq.s32.totalorder %s23, 3
      %p76 = por %p74, %p75
      %p77 = scmp.ne.s32.totalorder %s68, %s69
      %p78 = scmp.eq.s32.totalorder %s23, 0
      %p79 = por %p77, %p78
      %p80 = scmp.ne.s32.totalorder %s68, %s69
      %p81 = scmp.eq.s32.totalorder %s24, 3
      %p82 = por %p80, %p81
      %p84 = scmp.ne.s32.totalorder %s69, %s83
      %p85 = scmp.eq.s32.totalorder %s24, 0
      %p86 = por %p84, %p85
      %s88 = sadd.s32 %s87, 1
      %p91 = scmp.eq.s32.totalorder %s18, 3
      %p92 = scmp.ne.s32.totalorder %s87, %s89
      %p93 = scmp.eq.s32.totalorder %s18, 0
      %p94 = por %p92, %p93
      %p95 = scmp.ne.s32.totalorder %s87, %s89
      %p96 = scmp.eq.s32.totalorder %s23, 3
      %p97 = por %p95, %p96
      %p98 = scmp.ne.s32.totalorder %s89, %s90
      %p99 = scmp.eq.s32.totalorder %s23, 0
      %p100 = por %p98, %p99
      %p101 = scmp.ne.s32.totalorder %s89, %s90
      %p102 = scmp.eq.s32.totalorder %s24, 3
      %p103 = por %p101, %p102
      %p105 = scmp.ne.s32.totalorder %s90, %s104
      %p106 = scmp.eq.s32.totalorder %s24, 0
      %p107 = por %p105, %p106
      %s109 = sadd.s32 %s108, 1
      %p112 = scmp.eq.s32.totalorder %s18, 3
      %p113 = scmp.ne.s32.totalorder %s108, %s110
      %p114 = scmp.eq.s32.totalorder %s18, 0
      %p115 = por %p113, %p114
      %p116 = scmp.ne.s32.totalorder %s108, %s110
      %p117 = scmp.eq.s32.totalorder %s23, 3
      %p118 = por %p116, %p117
      %p119 = scmp.ne.s32.totalorder %s110, %s111
      %p120 = scmp.eq.s32.totalorder %s23, 0
      %p121 = por %p119, %p120
      %p122 = scmp.ne.s32.totalorder %s110, %s111
      %p123 = scmp.eq.s32.totalorder %s24, 3
      %p124 = por %p122, %p123
      %p126 = scmp.ne.s32.totalorder %s111, %s125
      %p127 = scmp.eq.s32.totalorder %s24, 0
      %p128 = por %p126, %p127
      %s130 = sadd.s32 %s129, 1
      %p133 = scmp.eq.s32.totalorder %s18, 3
      %p134 = scmp.ne.s32.totalorder %s129, %s131
      %p135 = scmp.eq.s32.totalorder %s18, 0
      %p136 = por %p134, %p135
      %p137 = scmp.ne.s32.totalorder %s129, %s131
      %p138 = scmp.eq.s32.totalorder %s23, 3
      %p139 = por %p137, %p138
      %p140 = scmp.ne.s32.totalorder %s131, %s132
      %p141 = scmp.eq.s32.totalorder %s23, 0
      %p142 = por %p140, %p141
      %p143 = scmp.ne.s32.totalorder %s131, %s132
      %p144 = scmp.eq.s32.totalorder %s24, 3
      %p145 = por %p143, %p144
      %p147 = scmp.ne.s32.totalorder %s132, %s146
      %p148 = scmp.eq.s32.totalorder %s24, 0
      %p149 = por %p147, %p148
      %s151 = sadd.s32 %s150, 1
      %p154 = scmp.eq.s32.totalorder %s18, 3
      %p155 = scmp.ne.s32.totalorder %s150, %s152
      %p156 = scmp.eq.s32.totalorder %s18, 0
      %p157 = por %p155, %p156
      %p158 = scmp.ne.s32.totalorder %s150, %s152
      %p159 = scmp.eq.s32.totalorder %s23, 3
      %p160 = por %p158, %p159
      %p161 = scmp.ne.s32.totalorder %s152, %s153
      %p162 = scmp.eq.s32.totalorder %s23, 0
      %p163 = por %p161, %p162
      %p164 = scmp.ne.s32.totalorder %s152, %s153
      %p165 = scmp.eq.s32.totalorder %s24, 3
      %p166 = por %p164, %p165
      %p168 = scmp.ne.s32.totalorder %s153, %s167
      %p169 = scmp.eq.s32.totalorder %s24, 0
      %p170 = por %p168, %p169
      %s172 = sadd.s32 %s171, 1
      %p175 = scmp.eq.s32.totalorder %s18, 3
      %p176 = scmp.ne.s32.totalorder %s171, %s173
      %p177 = scmp.eq.s32.totalorder %s18, 0
      %p178 = por %p176, %p177
      %p179 = scmp.ne.s32.totalorder %s171, %s173
      %p180 = scmp.eq.s32.totalorder %s23, 3
      %p181 = por %p179, %p180
      %p182 = scmp.ne.s32.totalorder %s173, %s174
      %p183 = scmp.eq.s32.totalorder %s23, 0
      %p184 = por %p182, %p183
      %p185 = scmp.ne.s32.totalorder %s173, %s174
      %p186 = scmp.eq.s32.totalorder %s24, 3
      %p187 = por %p185, %p186
      %p189 = scmp.ne.s32.totalorder %s174, %s188
      %p190 = scmp.eq.s32.totalorder %s24, 0
      %p191 = por %p189, %p190
      %s192 = ssub.s32 %s25, %s37
      %s193 = ssub.s32 %s26, %s33
      %s194 = sor.u32 %s192, %s193
      %p195 = scmp.eq.s32.totalorder %s194, 0
      %s197 = sadd.s32 %s196, 1
      %s198 = scalar_select %p195, %s196, %s197
      %p201 = pneg %p195
      %p202 = scmp.eq.s32.totalorder %s18, 3
      %p203 = por %p201, %p202
      %p204 = scmp.ne.s32.totalorder %s196, %s199
      %p205 = scmp.eq.s32.totalorder %s18, 0
      %p206 = por %p204, %p205
      %p207 = scmp.ne.s32.totalorder %s196, %s199
      %p208 = scmp.eq.s32.totalorder %s23, 3
      %p209 = por %p207, %p208
      %p210 = scmp.ne.s32.totalorder %s199, %s200
      %p211 = scmp.eq.s32.totalorder %s23, 0
      %p212 = por %p210, %p211
      %p213 = scmp.ne.s32.totalorder %s199, %s200
      %p214 = scmp.eq.s32.totalorder %s24, 3
      %p215 = por %p213, %p214
      %p217 = scmp.ne.s32.totalorder %s200, %s216
      %p218 = scmp.eq.s32.totalorder %s24, 0
      %p219 = por %p217, %p218
      %s220 = ssub.s32 %s25, %s37
      %s221 = ssub.s32 %s26, %s33
      %s222 = sor.u32 %s220, %s221
      %p223 = scmp.eq.s32.totalorder %s222, 0
      %s225 = sadd.s32 %s224, 1
      %s226 = scalar_select %p223, %s224, %s225
      %p229 = pneg %p223
      %p230 = scmp.eq.s32.totalorder %s18, 3
      %p231 = por %p229, %p230
      %p232 = scmp.ne.s32.totalorder %s224, %s227
      %p233 = scmp.eq.s32.totalorder %s18, 0
      %p234 = por %p232, %p233
      %p235 = scmp.ne.s32.totalorder %s224, %s227
      %p236 = scmp.eq.s32.totalorder %s23, 3
      %p237 = por %p235, %p236
      %p238 = scmp.ne.s32.totalorder %s227, %s228
      %p239 = scmp.eq.s32.totalorder %s23, 0
      %p240 = por %p238, %p239
      %p241 = scmp.ne.s32.totalorder %s227, %s228
      %p242 = scmp.eq.s32.totalorder %s24, 3
      %p243 = por %p241, %p242
      %p245 = scmp.ne.s32.totalorder %s228, %s244
      %p246 = scmp.eq.s32.totalorder %s24, 0
      %p247 = por %p245, %p246
      %p248 = scmp.le.s32.totalorder 1, %s18
      %p249 = scmp.lt.s32.totalorder %s18, 5
      %p250 = pnand %p248, %p249
      %p251 = pneg %p250
      // Predicated region
      $region9: #{tpu_custom_call.1} parent=5 // pred_check
        _
      $region10: #{tpu_custom_call.1} parent=5 // pred_check_branch
        %253 = sbr.rel (%p250) target = $region12
      $region11: #{tpu_custom_call.1} parent=5 // pred_region
        %s254 = ssub.s32 %s18, 1
        // Predicated region
        $region13: #{tpu_custom_call.1} parent=11 // pred_check
          %p255 = pneg %p79
        $region14: #{tpu_custom_call.1} parent=11 // pred_check_branch
          %257 = sbr.rel (%p255) target = $region16
        $region15: #{tpu_custom_call.1} parent=11 // pred_region
          _
        $region16: #{tpu_custom_call.1} parent=11 // pred_fallthru
          _
        // Predicated region
        $region17: #{tpu_custom_call.1} parent=11 // pred_check
          %p258 = pneg %p100
        $region18: #{tpu_custom_call.1} parent=11 // pred_check_branch
          %260 = sbr.rel (%p258) target = $region20
        $region19: #{tpu_custom_call.1} parent=11 // pred_region
          _
        $region20: #{tpu_custom_call.1} parent=11 // pred_fallthru
          _
        // Predicated region
        $region21: #{tpu_custom_call.1} parent=11 // pred_check
          %p261 = pneg %p121
        $region22: #{tpu_custom_call.1} parent=11 // pred_check_branch
          %263 = sbr.rel (%p261) target = $region24
        $region23: #{tpu_custom_call.1} parent=11 // pred_region
          _
        $region24: #{tpu_custom_call.1} parent=11 // pred_fallthru
          _
        // Predicated region
        $region25: #{tpu_custom_call.1} parent=11 // pred_check
          %p264 = pneg %p142
        $region26: #{tpu_custom_call.1} parent=11 // pred_check_branch
          %266 = sbr.rel (%p264) target = $region28
        $region27: #{tpu_custom_call.1} parent=11 // pred_region
          _
        $region28: #{tpu_custom_call.1} parent=11 // pred_fallthru
          _
        // Predicated region
        $region29: #{tpu_custom_call.1} parent=11 // pred_check
          %p267 = pneg %p163
        $region30: #{tpu_custom_call.1} parent=11 // pred_check_branch
          %269 = sbr.rel (%p267) target = $region32
        $region31: #{tpu_custom_call.1} parent=11 // pred_region
          _
        $region32: #{tpu_custom_call.1} parent=11 // pred_fallthru
          _
        // Predicated region
        $region33: #{tpu_custom_call.1} parent=11 // pred_check
          %p270 = pneg %p184
        $region34: #{tpu_custom_call.1} parent=11 // pred_check_branch
          %272 = sbr.rel (%p270) target = $region36
        $region35: #{tpu_custom_call.1} parent=11 // pred_region
          _
        $region36: #{tpu_custom_call.1} parent=11 // pred_fallthru
          _
      $region12: #{tpu_custom_call.1} parent=5 // pred_fallthru
        _
      %p273 = scmp.lt.s32.totalorder %s18, 4
      // Predicated region
      $region37: #{tpu_custom_call.1} parent=5 // pred_check
        %p274 = pneg %p273
      $region38: #{tpu_custom_call.1} parent=5 // pred_check_branch
        %276 = sbr.rel (%p274) target = $region40
      $region39: #{tpu_custom_call.1} parent=5 // pred_region
        // Predicated region
        $region41: #{tpu_custom_call.1} parent=39 // pred_check
          %p277 = pneg %p52
        $region42: #{tpu_custom_call.1} parent=39 // pred_check_branch
          %279 = sbr.rel (%p277) target = $region44
        $region43: #{tpu_custom_call.1} parent=39 // pred_region
          %s280 = smul.u32 64, %s26
          %p281 = scmp.lt.s32.totalorder %s25, 1
          %s282 = scalar_select %p281, %s25, 1
          %p283 = scmp.lt.s32.totalorder %s280, 127
          %s284 = scalar_select %p283, %s280, 127
          %s285 = smul.addr %s282, 128
          %s286 = sadd.s32 %s284, %s285
          %s287 = smul.addr %s286, 8
          %s288 = scalar_lea.vmem %s0, %s287
          %s289 = smul.u32 64, %s26
        $region44: #{tpu_custom_call.1} parent=39 // pred_fallthru
          _
      $region40: #{tpu_custom_call.1} parent=5 // pred_fallthru
        _
      %p290 = scmp.le.s32.totalorder 1, %s18
      %p291 = scmp.lt.s32.totalorder %s18, 5
      %p292 = pnand %p290, %p291
      %p293 = pneg %p292
      // Predicated region
      $region45: #{tpu_custom_call.1} parent=5 // pred_check
        _
      $region46: #{tpu_custom_call.1} parent=5 // pred_check_branch
        %295 = sbr.rel (%p292) target = $region48
      $region47: #{tpu_custom_call.1} parent=5 // pred_region
        %s296 = ssub.s32 %s18, 1
        %s297 = smul.u32 64, %s28
        %p298 = scmp.lt.s32.totalorder %s27, 1
        %s299 = scalar_select %p298, %s27, 1
        %p300 = scmp.lt.s32.totalorder %s297, 127
        %s301 = scalar_select %p300, %s297, 127
        %s302 = smul.addr %s299, 128
        %s303 = sadd.s32 %s301, %s302
        %s304 = smul.addr %s303, 8
        %s305 = scalar_lea.vmem %s0, %s304
        %p306 = pneg %p58
        %p307 = pneg %p55
        %p308 = pneg %p79
        %p309 = pneg %p76
        %p310 = pneg %p100
        %p311 = pneg %p97
        %p312 = pneg %p121
        %p313 = pneg %p118
        %p314 = pneg %p142
        %p315 = pneg %p139
        %p316 = pneg %p163
        %p317 = pneg %p160
        %p318 = pneg %p184
        %p319 = pneg %p181
        %p320 = pneg %p212
        %p321 = pneg %p209
        %s322 = sand.u32 %s199, 1
        %s323 = scalar_lea.sflag [#allocation3], %s322
        %s324 = sand.u32 %s199, 1
        %s325 = smul.addr %s324, 256
        %s326 = scalar_lea.vmem [#allocation2], %s325
        %p327 = pneg %p240
        %p328 = pneg %p237
        %s329 = smul.u32 64, %s28
        %p330 = scmp.lt.s32.totalorder %s27, 1
        %s331 = scalar_select %p330, %s27, 1
        %p332 = scmp.lt.s32.totalorder %s329, 127
        %s333 = scalar_select %p332, %s329, 127
        %s334 = smul.addr %s331, 128
        %s335 = sadd.s32 %s333, %s334
        %s336 = smul.addr %s335, 8
        %s337 = scalar_lea.vmem %s8, %s336
        %s338 = smul.u32 64, %s28
        %p339 = scmp.lt.s32.totalorder %s27, 1
        %s340 = scalar_select %p339, %s27, 1
        %p341 = scmp.lt.s32.totalorder %s338, 127
        %s342 = scalar_select %p341, %s338, 127
        %s343 = smul.addr %s340, 128
        %s344 = sadd.s32 %s342, %s343
        %s345 = smul.addr %s344, 8
        %s346 = scalar_lea.vmem %s0, %s345
        %s347 = smul.u32 64, %s28
        %s348 = smul.u32 4, %s28
        %s349 = smul.u32 64, %s28
        %p350 = scmp.lt.s32.totalorder %s27, 1
        %s351 = scalar_select %p350, %s27, 1
        %p352 = scmp.lt.s32.totalorder %s349, 127
        %s353 = scalar_select %p352, %s349, 127
        %s354 = smul.addr %s351, 128
        %s355 = sadd.s32 %s353, %s354
        %s356 = smul.addr %s355, 8
        %s357 = scalar_lea.vmem %s8, %s356
        %s358 = smul.u32 64, %s28
        %v359 = vld [vmem:[%s346] sm:$0xff]
        %v360 = vld [vmem:[%s346 + $0x8] sm:$0xff]
        %v361 = vld [vmem:[%s346 + $0x10] sm:$0xff]
        %v362 = vld [vmem:[%s346 + $0x18] sm:$0xff]
        %v363 = vld [vmem:[%s346 + $0x20] sm:$0xff]
        %v364 = vld [vmem:[%s346 + $0x28] sm:$0xff]
        %v365 = vld [vmem:[%s346 + $0x30] sm:$0xff]
        %v366 = vld [vmem:[%s346 + $0x38] sm:$0xff]
        %v367 = vld [vmem:[%s346 + $0x40] sm:$0xff]
        %v368 = vld [vmem:[%s346 + $0x48] sm:$0xff]
        %v369 = vld [vmem:[%s346 + $0x50] sm:$0xff]
        %v370 = vld [vmem:[%s346 + $0x58] sm:$0xff]
        %v371 = vld [vmem:[%s346 + $0x60] sm:$0xff]
        %v372 = vld [vmem:[%s346 + $0x68] sm:$0xff]
        %v373 = vld [vmem:[%s346 + $0x70] sm:$0xff]
        %v374 = vld [vmem:[%s346 + $0x78] sm:$0xff]
        %v375 = vld [vmem:[%s346 + $0x80] sm:$0xff]
        %v376 = vld [vmem:[%s346 + $0x88] sm:$0xff]
        %v377 = vld [vmem:[%s346 + $0x90] sm:$0xff]
        %v378 = vld [vmem:[%s346 + $0x98] sm:$0xff]
        %v379 = vld [vmem:[%s346 + $0xa0] sm:$0xff]
        %v380 = vld [vmem:[%s346 + $0xa8] sm:$0xff]
        %v381 = vld [vmem:[%s346 + $0xb0] sm:$0xff]
        %v382 = vld [vmem:[%s346 + $0xb8] sm:$0xff]
        %v383 = vld [vmem:[%s346 + $0xc0] sm:$0xff]
        %v384 = vld [vmem:[%s346 + $0xc8] sm:$0xff]
        %v385 = vld [vmem:[%s346 + $0xd0] sm:$0xff]
        %v386 = vld [vmem:[%s346 + $0xd8] sm:$0xff]
        %v387 = vld [vmem:[%s346 + $0xe0] sm:$0xff]
        %v388 = vld [vmem:[%s346 + $0xe8] sm:$0xff]
        %v389 = vld [vmem:[%s346 + $0xf0] sm:$0xff]
        %v390 = vld [vmem:[%s346 + $0xf8] sm:$0xff]
        %v391 = vld [vmem:[%s346 + $0x100] sm:$0xff]
        %v392 = vld [vmem:[%s346 + $0x108] sm:$0xff]
        %v393 = vld [vmem:[%s346 + $0x110] sm:$0xff]
        %v394 = vld [vmem:[%s346 + $0x118] sm:$0xff]
        %v395 = vld [vmem:[%s346 + $0x120] sm:$0xff]
        %v396 = vld [vmem:[%s346 + $0x128] sm:$0xff]
        %v397 = vld [vmem:[%s346 + $0x130] sm:$0xff]
        %v398 = vld [vmem:[%s346 + $0x138] sm:$0xff]
        %v399 = vld [vmem:[%s346 + $0x140] sm:$0xff]
        %v400 = vld [vmem:[%s346 + $0x148] sm:$0xff]
        %v401 = vld [vmem:[%s346 + $0x150] sm:$0xff]
        %v402 = vld [vmem:[%s346 + $0x158] sm:$0xff]
        %v403 = vld [vmem:[%s346 + $0x160] sm:$0xff]
        %v404 = vld [vmem:[%s346 + $0x168] sm:$0xff]
        %v405 = vld [vmem:[%s346 + $0x170] sm:$0xff]
        %v406 = vld [vmem:[%s346 + $0x178] sm:$0xff]
        %v407 = vld [vmem:[%s346 + $0x180] sm:$0xff]
        %v408 = vld [vmem:[%s346 + $0x188] sm:$0xff]
        %v409 = vld [vmem:[%s346 + $0x190] sm:$0xff]
        %v410 = vld [vmem:[%s346 + $0x198] sm:$0xff]
        %v411 = vld [vmem:[%s346 + $0x1a0] sm:$0xff]
        %v412 = vld [vmem:[%s346 + $0x1a8] sm:$0xff]
        %v413 = vld [vmem:[%s346 + $0x1b0] sm:$0xff]
        %v414 = vld [vmem:[%s346 + $0x1b8] sm:$0xff]
        %v415 = vld [vmem:[%s346 + $0x1c0] sm:$0xff]
        %v416 = vld [vmem:[%s346 + $0x1c8] sm:$0xff]
        %v417 = vld [vmem:[%s346 + $0x1d0] sm:$0xff]
        %v418 = vld [vmem:[%s346 + $0x1d8] sm:$0xff]
        %v419 = vld [vmem:[%s346 + $0x1e0] sm:$0xff]
        %v420 = vld [vmem:[%s346 + $0x1e8] sm:$0xff]
        %v421 = vld [vmem:[%s346 + $0x1f0] sm:$0xff]
        %v422 = vld [vmem:[%s346 + $0x1f8] sm:$0xff]
        %v423 = vld [vmem:[%s1] sm:$0x7]
        %425 = vset.pattern.permute.xlu0 0
        %426 = vperm.xlu0 %425, %v359
        %v427 = vpop.permute.xlu0 %426
        %430 = vset.pattern.permute.xlu0 0
        %431 = vperm.xlu0 %430, %v360
        %v432 = vpop.permute.xlu0 %431
        %435 = vset.pattern.permute.xlu0 0
        %436 = vperm.xlu0 %435, %v361
        %v437 = vpop.permute.xlu0 %436
        %440 = vset.pattern.permute.xlu0 0
        %441 = vperm.xlu0 %440, %v362
        %v442 = vpop.permute.xlu0 %441
        %445 = vset.pattern.permute.xlu0 0
        %446 = vperm.xlu0 %445, %v363
        %v447 = vpop.permute.xlu0 %446
        %450 = vset.pattern.permute.xlu0 0
        %451 = vperm.xlu0 %450, %v364
        %v452 = vpop.permute.xlu0 %451
        %455 = vset.pattern.permute.xlu0 0
        %456 = vperm.xlu0 %455, %v365
        %v457 = vpop.permute.xlu0 %456
        %460 = vset.pattern.permute.xlu0 0
        %461 = vperm.xlu0 %460, %v366
        %v462 = vpop.permute.xlu0 %461
        %465 = vset.pattern.permute.xlu0 0
        %466 = vperm.xlu0 %465, %v367
        %v467 = vpop.permute.xlu0 %466
        %470 = vset.pattern.permute.xlu0 0
        %471 = vperm.xlu0 %470, %v368
        %v472 = vpop.permute.xlu0 %471
        %475 = vset.pattern.permute.xlu0 0
        %476 = vperm.xlu0 %475, %v369
        %v477 = vpop.permute.xlu0 %476
        %480 = vset.pattern.permute.xlu0 0
        %481 = vperm.xlu0 %480, %v370
        %v482 = vpop.permute.xlu0 %481
        %485 = vset.pattern.permute.xlu0 0
        %486 = vperm.xlu0 %485, %v371
        %v487 = vpop.permute.xlu0 %486
        %490 = vset.pattern.permute.xlu0 0
        %491 = vperm.xlu0 %490, %v372
        %v492 = vpop.permute.xlu0 %491
        %495 = vset.pattern.permute.xlu0 0
        %496 = vperm.xlu0 %495, %v373
        %v497 = vpop.permute.xlu0 %496
        %500 = vset.pattern.permute.xlu0 0
        %501 = vperm.xlu0 %500, %v374
        %v502 = vpop.permute.xlu0 %501
        %505 = vset.pattern.permute.xlu0 0
        %506 = vperm.xlu0 %505, %v375
        %v507 = vpop.permute.xlu0 %506
        %510 = vset.pattern.permute.xlu0 0
        %511 = vperm.xlu0 %510, %v376
        %v512 = vpop.permute.xlu0 %511
        %515 = vset.pattern.permute.xlu0 0
        %516 = vperm.xlu0 %515, %v377
        %v517 = vpop.permute.xlu0 %516
        %520 = vset.pattern.permute.xlu0 0
        %521 = vperm.xlu0 %520, %v378
        %v522 = vpop.permute.xlu0 %521
        %525 = vset.pattern.permute.xlu0 0
        %526 = vperm.xlu0 %525, %v379
        %v527 = vpop.permute.xlu0 %526
        %530 = vset.pattern.permute.xlu0 0
        %531 = vperm.xlu0 %530, %v380
        %v532 = vpop.permute.xlu0 %531
        %535 = vset.pattern.permute.xlu0 0
        %536 = vperm.xlu0 %535, %v381
        %v537 = vpop.permute.xlu0 %536
        %540 = vset.pattern.permute.xlu0 0
        %541 = vperm.xlu0 %540, %v382
        %v542 = vpop.permute.xlu0 %541
        %545 = vset.pattern.permute.xlu0 0
        %546 = vperm.xlu0 %545, %v383
        %v547 = vpop.permute.xlu0 %546
        %550 = vset.pattern.permute.xlu0 0
        %551 = vperm.xlu0 %550, %v384
        %v552 = vpop.permute.xlu0 %551
        %555 = vset.pattern.permute.xlu0 0
        %556 = vperm.xlu0 %555, %v385
        %v557 = vpop.permute.xlu0 %556
        %560 = vset.pattern.permute.xlu0 0
        %561 = vperm.xlu0 %560, %v386
        %v562 = vpop.permute.xlu0 %561
        %565 = vset.pattern.permute.xlu0 0
        %566 = vperm.xlu0 %565, %v387
        %v567 = vpop.permute.xlu0 %566
        %570 = vset.pattern.permute.xlu0 0
        %571 = vperm.xlu0 %570, %v388
        %v572 = vpop.permute.xlu0 %571
        %575 = vset.pattern.permute.xlu0 0
        %576 = vperm.xlu0 %575, %v389
        %v577 = vpop.permute.xlu0 %576
        %580 = vset.pattern.permute.xlu0 0
        %581 = vperm.xlu0 %580, %v390
        %v582 = vpop.permute.xlu0 %581
        %585 = vset.pattern.permute.xlu0 0
        %586 = vperm.xlu0 %585, %v391
        %v587 = vpop.permute.xlu0 %586
        %590 = vset.pattern.permute.xlu0 0
        %591 = vperm.xlu0 %590, %v392
        %v592 = vpop.permute.xlu0 %591
        %595 = vset.pattern.permute.xlu0 0
        %596 = vperm.xlu0 %595, %v393
        %v597 = vpop.permute.xlu0 %596
        %600 = vset.pattern.permute.xlu0 0
        %601 = vperm.xlu0 %600, %v394
        %v602 = vpop.permute.xlu0 %601
        %605 = vset.pattern.permute.xlu0 0
        %606 = vperm.xlu0 %605, %v395
        %v607 = vpop.permute.xlu0 %606
        %610 = vset.pattern.permute.xlu0 0
        %611 = vperm.xlu0 %610, %v396
        %v612 = vpop.permute.xlu0 %611
        %615 = vset.pattern.permute.xlu0 0
        %616 = vperm.xlu0 %615, %v397
        %v617 = vpop.permute.xlu0 %616
        %620 = vset.pattern.permute.xlu0 0
        %621 = vperm.xlu0 %620, %v398
        %v622 = vpop.permute.xlu0 %621
        %625 = vset.pattern.permute.xlu0 0
        %626 = vperm.xlu0 %625, %v399
        %v627 = vpop.permute.xlu0 %626
        %630 = vset.pattern.permute.xlu0 0
        %631 = vperm.xlu0 %630, %v400
        %v632 = vpop.permute.xlu0 %631
        %635 = vset.pattern.permute.xlu0 0
        %636 = vperm.xlu0 %635, %v401
        %v637 = vpop.permute.xlu0 %636
        %640 = vset.pattern.permute.xlu0 0
        %641 = vperm.xlu0 %640, %v402
        %v642 = vpop.permute.xlu0 %641
        %645 = vset.pattern.permute.xlu0 0
        %646 = vperm.xlu0 %645, %v403
        %v647 = vpop.permute.xlu0 %646
        %650 = vset.pattern.permute.xlu0 0
        %651 = vperm.xlu0 %650, %v404
        %v652 = vpop.permute.xlu0 %651
        %655 = vset.pattern.permute.xlu0 0
        %656 = vperm.xlu0 %655, %v405
        %v657 = vpop.permute.xlu0 %656
        %660 = vset.pattern.permute.xlu0 0
        %661 = vperm.xlu0 %660, %v406
        %v662 = vpop.permute.xlu0 %661
        %665 = vset.pattern.permute.xlu0 0
        %666 = vperm.xlu0 %665, %v407
        %v667 = vpop.permute.xlu0 %666
        %670 = vset.pattern.permute.xlu0 0
        %671 = vperm.xlu0 %670, %v408
        %v672 = vpop.permute.xlu0 %671
        %675 = vset.pattern.permute.xlu0 0
        %676 = vperm.xlu0 %675, %v409
        %v677 = vpop.permute.xlu0 %676
        %680 = vset.pattern.permute.xlu0 0
        %681 = vperm.xlu0 %680, %v410
        %v682 = vpop.permute.xlu0 %681
        %685 = vset.pattern.permute.xlu0 0
        %686 = vperm.xlu0 %685, %v411
        %v687 = vpop.permute.xlu0 %686
        %690 = vset.pattern.permute.xlu0 0
        %691 = vperm.xlu0 %690, %v412
        %v692 = vpop.permute.xlu0 %691
        %695 = vset.pattern.permute.xlu0 0
        %696 = vperm.xlu0 %695, %v413
        %v697 = vpop.permute.xlu0 %696
        %700 = vset.pattern.permute.xlu0 0
        %701 = vperm.xlu0 %700, %v414
        %v702 = vpop.permute.xlu0 %701
        %705 = vset.pattern.permute.xlu0 0
        %706 = vperm.xlu0 %705, %v415
        %v707 = vpop.permute.xlu0 %706
        %710 = vset.pattern.permute.xlu0 0
        %711 = vperm.xlu0 %710, %v416
        %v712 = vpop.permute.xlu0 %711
        %715 = vset.pattern.permute.xlu0 0
        %716 = vperm.xlu0 %715, %v417
        %v717 = vpop.permute.xlu0 %716
        %720 = vset.pattern.permute.xlu0 0
        %721 = vperm.xlu0 %720, %v418
        %v722 = vpop.permute.xlu0 %721
        %725 = vset.pattern.permute.xlu0 0
        %726 = vperm.xlu0 %725, %v419
        %v727 = vpop.permute.xlu0 %726
        %730 = vset.pattern.permute.xlu0 0
        %731 = vperm.xlu0 %730, %v420
        %v732 = vpop.permute.xlu0 %731
        %735 = vset.pattern.permute.xlu0 0
        %736 = vperm.xlu0 %735, %v421
        %v737 = vpop.permute.xlu0 %736
        %740 = vset.pattern.permute.xlu0 0
        %741 = vperm.xlu0 %740, %v422
        %v742 = vpop.permute.xlu0 %741
        %v744 = vlaneseq
        %v745 = vshrl.u32 %v744, 7
        %v746 = vsub.s32 0, %v745
        %v747 = vrot.slane %v423, %v746
        %v748 = vmul.f32 %v427, %v747
        %v749 = vmul.f32 %v432, %v747
        %v750 = vmul.f32 %v437, %v747
        %v751 = vmul.f32 %v442, %v747
        %v752 = vmul.f32 %v447, %v747
        %v753 = vmul.f32 %v452, %v747
        %v754 = vmul.f32 %v457, %v747
        %v755 = vmul.f32 %v462, %v747
        %v756 = vmul.f32 %v467, %v747
        %v757 = vmul.f32 %v472, %v747
        %v758 = vmul.f32 %v477, %v747
        %v759 = vmul.f32 %v482, %v747
        %v760 = vmul.f32 %v487, %v747
        %v761 = vmul.f32 %v492, %v747
        %v762 = vmul.f32 %v497, %v747
        %v763 = vmul.f32 %v502, %v747
        %v764 = vmul.f32 %v507, %v747
        %v765 = vmul.f32 %v512, %v747
        %v766 = vmul.f32 %v517, %v747
        %v767 = vmul.f32 %v522, %v747
        %v768 = vmul.f32 %v527, %v747
        %v769 = vmul.f32 %v532, %v747
        %v770 = vmul.f32 %v537, %v747
        %v771 = vmul.f32 %v542, %v747
        %v772 = vmul.f32 %v547, %v747
        %v773 = vmul.f32 %v552, %v747
        %v774 = vmul.f32 %v557, %v747
        %v775 = vmul.f32 %v562, %v747
        %v776 = vmul.f32 %v567, %v747
        %v777 = vmul.f32 %v572, %v747
        %v778 = vmul.f32 %v577, %v747
        %v779 = vmul.f32 %v582, %v747
        %v780 = vmul.f32 %v587, %v747
        %v781 = vmul.f32 %v592, %v747
        %v782 = vmul.f32 %v597, %v747
        %v783 = vmul.f32 %v602, %v747
        %v784 = vmul.f32 %v607, %v747
        %v785 = vmul.f32 %v612, %v747
        %v786 = vmul.f32 %v617, %v747
        %v787 = vmul.f32 %v622, %v747
        %v788 = vmul.f32 %v627, %v747
        %v789 = vmul.f32 %v632, %v747
        %v790 = vmul.f32 %v637, %v747
        %v791 = vmul.f32 %v642, %v747
        %v792 = vmul.f32 %v647, %v747
        %v793 = vmul.f32 %v652, %v747
        %v794 = vmul.f32 %v657, %v747
        %v795 = vmul.f32 %v662, %v747
        %v796 = vmul.f32 %v667, %v747
        %v797 = vmul.f32 %v672, %v747
        %v798 = vmul.f32 %v677, %v747
        %v799 = vmul.f32 %v682, %v747
        %v800 = vmul.f32 %v687, %v747
        %v801 = vmul.f32 %v692, %v747
        %v802 = vmul.f32 %v697, %v747
        %v803 = vmul.f32 %v702, %v747
        %v804 = vmul.f32 %v707, %v747
        %v805 = vmul.f32 %v712, %v747
        %v806 = vmul.f32 %v717, %v747
        %v807 = vmul.f32 %v722, %v747
        %v808 = vmul.f32 %v727, %v747
        %v809 = vmul.f32 %v732, %v747
        %v810 = vmul.f32 %v737, %v747
        %v811 = vmul.f32 %v742, %v747
        %812 = vset.pattern.permute.xlu0 1
        %813 = vperm.xlu0 %812, %v359
        %v814 = vpop.permute.xlu0 %813
        %816 = vset.pattern.permute.xlu0 1
        %817 = vperm.xlu0 %816, %v360
        %v818 = vpop.permute.xlu0 %817
        %820 = vset.pattern.permute.xlu0 1
        %821 = vperm.xlu0 %820, %v361
        %v822 = vpop.permute.xlu0 %821
        %824 = vset.pattern.permute.xlu0 1
        %825 = vperm.xlu0 %824, %v362
        %v826 = vpop.permute.xlu0 %825
        %828 = vset.pattern.permute.xlu0 1
        %829 = vperm.xlu0 %828, %v363
        %v830 = vpop.permute.xlu0 %829
        %832 = vset.pattern.permute.xlu0 1
        %833 = vperm.xlu0 %832, %v364
        %v834 = vpop.permute.xlu0 %833
        %836 = vset.pattern.permute.xlu0 1
        %837 = vperm.xlu0 %836, %v365
        %v838 = vpop.permute.xlu0 %837
        %840 = vset.pattern.permute.xlu0 1
        %841 = vperm.xlu0 %840, %v366
        %v842 = vpop.permute.xlu0 %841
        %844 = vset.pattern.permute.xlu0 1
        %845 = vperm.xlu0 %844, %v367
        %v846 = vpop.permute.xlu0 %845
        %848 = vset.pattern.permute.xlu0 1
        %849 = vperm.xlu0 %848, %v368
        %v850 = vpop.permute.xlu0 %849
        %852 = vset.pattern.permute.xlu0 1
        %853 = vperm.xlu0 %852, %v369
        %v854 = vpop.permute.xlu0 %853
        %856 = vset.pattern.permute.xlu0 1
        %857 = vperm.xlu0 %856, %v370
        %v858 = vpop.permute.xlu0 %857
        %860 = vset.pattern.permute.xlu0 1
        %861 = vperm.xlu0 %860, %v371
        %v862 = vpop.permute.xlu0 %861
        %864 = vset.pattern.permute.xlu0 1
        %865 = vperm.xlu0 %864, %v372
        %v866 = vpop.permute.xlu0 %865
        %868 = vset.pattern.permute.xlu0 1
        %869 = vperm.xlu0 %868, %v373
        %v870 = vpop.permute.xlu0 %869
        %872 = vset.pattern.permute.xlu0 1
        %873 = vperm.xlu0 %872, %v374
        %v874 = vpop.permute.xlu0 %873
        %876 = vset.pattern.permute.xlu0 1
        %877 = vperm.xlu0 %876, %v375
        %v878 = vpop.permute.xlu0 %877
        %880 = vset.pattern.permute.xlu0 1
        %881 = vperm.xlu0 %880, %v376
        %v882 = vpop.permute.xlu0 %881
        %884 = vset.pattern.permute.xlu0 1
        %885 = vperm.xlu0 %884, %v377
        %v886 = vpop.permute.xlu0 %885
        %888 = vset.pattern.permute.xlu0 1
        %889 = vperm.xlu0 %888, %v378
        %v890 = vpop.permute.xlu0 %889
        %892 = vset.pattern.permute.xlu0 1
        %893 = vperm.xlu0 %892, %v379
        %v894 = vpop.permute.xlu0 %893
        %896 = vset.pattern.permute.xlu0 1
        %897 = vperm.xlu0 %896, %v380
        %v898 = vpop.permute.xlu0 %897
        %900 = vset.pattern.permute.xlu0 1
        %901 = vperm.xlu0 %900, %v381
        %v902 = vpop.permute.xlu0 %901
        %904 = vset.pattern.permute.xlu0 1
        %905 = vperm.xlu0 %904, %v382
        %v906 = vpop.permute.xlu0 %905
        %908 = vset.pattern.permute.xlu0 1
        %909 = vperm.xlu0 %908, %v383
        %v910 = vpop.permute.xlu0 %909
        %912 = vset.pattern.permute.xlu0 1
        %913 = vperm.xlu0 %912, %v384
        %v914 = vpop.permute.xlu0 %913
        %916 = vset.pattern.permute.xlu0 1
        %917 = vperm.xlu0 %916, %v385
        %v918 = vpop.permute.xlu0 %917
        %920 = vset.pattern.permute.xlu0 1
        %921 = vperm.xlu0 %920, %v386
        %v922 = vpop.permute.xlu0 %921
        %924 = vset.pattern.permute.xlu0 1
        %925 = vperm.xlu0 %924, %v387
        %v926 = vpop.permute.xlu0 %925
        %928 = vset.pattern.permute.xlu0 1
        %929 = vperm.xlu0 %928, %v388
        %v930 = vpop.permute.xlu0 %929
        %932 = vset.pattern.permute.xlu0 1
        %933 = vperm.xlu0 %932, %v389
        %v934 = vpop.permute.xlu0 %933
        %936 = vset.pattern.permute.xlu0 1
        %937 = vperm.xlu0 %936, %v390
        %v938 = vpop.permute.xlu0 %937
        %940 = vset.pattern.permute.xlu0 1
        %941 = vperm.xlu0 %940, %v391
        %v942 = vpop.permute.xlu0 %941
        %944 = vset.pattern.permute.xlu0 1
        %945 = vperm.xlu0 %944, %v392
        %v946 = vpop.permute.xlu0 %945
        %948 = vset.pattern.permute.xlu0 1
        %949 = vperm.xlu0 %948, %v393
        %v950 = vpop.permute.xlu0 %949
        %952 = vset.pattern.permute.xlu0 1
        %953 = vperm.xlu0 %952, %v394
        %v954 = vpop.permute.xlu0 %953
        %956 = vset.pattern.permute.xlu0 1
        %957 = vperm.xlu0 %956, %v395
        %v958 = vpop.permute.xlu0 %957
        %960 = vset.pattern.permute.xlu0 1
        %961 = vperm.xlu0 %960, %v396
        %v962 = vpop.permute.xlu0 %961
        %964 = vset.pattern.permute.xlu0 1
        %965 = vperm.xlu0 %964, %v397
        %v966 = vpop.permute.xlu0 %965
        %968 = vset.pattern.permute.xlu0 1
        %969 = vperm.xlu0 %968, %v398
        %v970 = vpop.permute.xlu0 %969
        %972 = vset.pattern.permute.xlu0 1
        %973 = vperm.xlu0 %972, %v399
        %v974 = vpop.permute.xlu0 %973
        %976 = vset.pattern.permute.xlu0 1
        %977 = vperm.xlu0 %976, %v400
        %v978 = vpop.permute.xlu0 %977
        %980 = vset.pattern.permute.xlu0 1
        %981 = vperm.xlu0 %980, %v401
        %v982 = vpop.permute.xlu0 %981
        %984 = vset.pattern.permute.xlu0 1
        %985 = vperm.xlu0 %984, %v402
        %v986 = vpop.permute.xlu0 %985
        %988 = vset.pattern.permute.xlu0 1
        %989 = vperm.xlu0 %988, %v403
        %v990 = vpop.permute.xlu0 %989
        %992 = vset.pattern.permute.xlu0 1
        %993 = vperm.xlu0 %992, %v404
        %v994 = vpop.permute.xlu0 %993
        %996 = vset.pattern.permute.xlu0 1
        %997 = vperm.xlu0 %996, %v405
        %v998 = vpop.permute.xlu0 %997
        %1000 = vset.pattern.permute.xlu0 1
        %1001 = vperm.xlu0 %1000, %v406
        %v1002 = vpop.permute.xlu0 %1001
        %1004 = vset.pattern.permute.xlu0 1
        %1005 = vperm.xlu0 %1004, %v407
        %v1006 = vpop.permute.xlu0 %1005
        %1008 = vset.pattern.permute.xlu0 1
        %1009 = vperm.xlu0 %1008, %v408
        %v1010 = vpop.permute.xlu0 %1009
        %1012 = vset.pattern.permute.xlu0 1
        %1013 = vperm.xlu0 %1012, %v409
        %v1014 = vpop.permute.xlu0 %1013
        %1016 = vset.pattern.permute.xlu0 1
        %1017 = vperm.xlu0 %1016, %v410
        %v1018 = vpop.permute.xlu0 %1017
        %1020 = vset.pattern.permute.xlu0 1
        %1021 = vperm.xlu0 %1020, %v411
        %v1022 = vpop.permute.xlu0 %1021
        %1024 = vset.pattern.permute.xlu0 1
        %1025 = vperm.xlu0 %1024, %v412
        %v1026 = vpop.permute.xlu0 %1025
        %1028 = vset.pattern.permute.xlu0 1
        %1029 = vperm.xlu0 %1028, %v413
        %v1030 = vpop.permute.xlu0 %1029
        %1032 = vset.pattern.permute.xlu0 1
        %1033 = vperm.xlu0 %1032, %v414
        %v1034 = vpop.permute.xlu0 %1033
        %1036 = vset.pattern.permute.xlu0 1
        %1037 = vperm.xlu0 %1036, %v415
        %v1038 = vpop.permute.xlu0 %1037
        %1040 = vset.pattern.permute.xlu0 1
        %1041 = vperm.xlu0 %1040, %v416
        %v1042 = vpop.permute.xlu0 %1041
        %1044 = vset.pattern.permute.xlu0 1
        %1045 = vperm.xlu0 %1044, %v417
        %v1046 = vpop.permute.xlu0 %1045
        %1048 = vset.pattern.permute.xlu0 1
        %1049 = vperm.xlu0 %1048, %v418
        %v1050 = vpop.permute.xlu0 %1049
        %1052 = vset.pattern.permute.xlu0 1
        %1053 = vperm.xlu0 %1052, %v419
        %v1054 = vpop.permute.xlu0 %1053
        %1056 = vset.pattern.permute.xlu0 1
        %1057 = vperm.xlu0 %1056, %v420
        %v1058 = vpop.permute.xlu0 %1057
        %1060 = vset.pattern.permute.xlu0 1
        %1061 = vperm.xlu0 %1060, %v421
        %v1062 = vpop.permute.xlu0 %1061
        %1064 = vset.pattern.permute.xlu0 1
        %1065 = vperm.xlu0 %1064, %v422
        %v1066 = vpop.permute.xlu0 %1065
        %v1068 = vlaneseq
        %v1069 = vshrl.u32 %v1068, 7
        %v1070 = vsub.s32 1, %v1069
        %v1071 = vrot.slane %v423, %v1070
        %v1072 = vmul.f32 %v814, %v1071
        %v1073 = vmul.f32 %v818, %v1071
        %v1074 = vmul.f32 %v822, %v1071
        %v1075 = vmul.f32 %v826, %v1071
        %v1076 = vmul.f32 %v830, %v1071
        %v1077 = vmul.f32 %v834, %v1071
        %v1078 = vmul.f32 %v838, %v1071
        %v1079 = vmul.f32 %v842, %v1071
        %v1080 = vmul.f32 %v846, %v1071
        %v1081 = vmul.f32 %v850, %v1071
        %v1082 = vmul.f32 %v854, %v1071
        %v1083 = vmul.f32 %v858, %v1071
        %v1084 = vmul.f32 %v862, %v1071
        %v1085 = vmul.f32 %v866, %v1071
        %v1086 = vmul.f32 %v870, %v1071
        %v1087 = vmul.f32 %v874, %v1071
        %v1088 = vmul.f32 %v878, %v1071
        %v1089 = vmul.f32 %v882, %v1071
        %v1090 = vmul.f32 %v886, %v1071
        %v1091 = vmul.f32 %v890, %v1071
        %v1092 = vmul.f32 %v894, %v1071
        %v1093 = vmul.f32 %v898, %v1071
        %v1094 = vmul.f32 %v902, %v1071
        %v1095 = vmul.f32 %v906, %v1071
        %v1096 = vmul.f32 %v910, %v1071
        %v1097 = vmul.f32 %v914, %v1071
        %v1098 = vmul.f32 %v918, %v1071
        %v1099 = vmul.f32 %v922, %v1071
        %v1100 = vmul.f32 %v926, %v1071
        %v1101 = vmul.f32 %v930, %v1071
        %v1102 = vmul.f32 %v934, %v1071
        %v1103 = vmul.f32 %v938, %v1071
        %v1104 = vmul.f32 %v942, %v1071
        %v1105 = vmul.f32 %v946, %v1071
        %v1106 = vmul.f32 %v950, %v1071
        %v1107 = vmul.f32 %v954, %v1071
        %v1108 = vmul.f32 %v958, %v1071
        %v1109 = vmul.f32 %v962, %v1071
        %v1110 = vmul.f32 %v966, %v1071
        %v1111 = vmul.f32 %v970, %v1071
        %v1112 = vmul.f32 %v974, %v1071
        %v1113 = vmul.f32 %v978, %v1071
        %v1114 = vmul.f32 %v982, %v1071
        %v1115 = vmul.f32 %v986, %v1071
        %v1116 = vmul.f32 %v990, %v1071
        %v1117 = vmul.f32 %v994, %v1071
        %v1118 = vmul.f32 %v998, %v1071
        %v1119 = vmul.f32 %v1002, %v1071
        %v1120 = vmul.f32 %v1006, %v1071
        %v1121 = vmul.f32 %v1010, %v1071
        %v1122 = vmul.f32 %v1014, %v1071
        %v1123 = vmul.f32 %v1018, %v1071
        %v1124 = vmul.f32 %v1022, %v1071
        %v1125 = vmul.f32 %v1026, %v1071
        %v1126 = vmul.f32 %v1030, %v1071
        %v1127 = vmul.f32 %v1034, %v1071
        %v1128 = vmul.f32 %v1038, %v1071
        %v1129 = vmul.f32 %v1042, %v1071
        %v1130 = vmul.f32 %v1046, %v1071
        %v1131 = vmul.f32 %v1050, %v1071
        %v1132 = vmul.f32 %v1054, %v1071
        %v1133 = vmul.f32 %v1058, %v1071
        %v1134 = vmul.f32 %v1062, %v1071
        %v1135 = vmul.f32 %v1066, %v1071
        %v1136 = vadd.f32 %v748, %v1072
        %v1137 = vadd.f32 %v749, %v1073
        %v1138 = vadd.f32 %v750, %v1074
        %v1139 = vadd.f32 %v751, %v1075
        %v1140 = vadd.f32 %v752, %v1076
        %v1141 = vadd.f32 %v753, %v1077
        %v1142 = vadd.f32 %v754, %v1078
        %v1143 = vadd.f32 %v755, %v1079
        %v1144 = vadd.f32 %v756, %v1080
        %v1145 = vadd.f32 %v757, %v1081
        %v1146 = vadd.f32 %v758, %v1082
        %v1147 = vadd.f32 %v759, %v1083
        %v1148 = vadd.f32 %v760, %v1084
        %v1149 = vadd.f32 %v761, %v1085
        %v1150 = vadd.f32 %v762, %v1086
        %v1151 = vadd.f32 %v763, %v1087
        %v1152 = vadd.f32 %v764, %v1088
        %v1153 = vadd.f32 %v765, %v1089
        %v1154 = vadd.f32 %v766, %v1090
        %v1155 = vadd.f32 %v767, %v1091
        %v1156 = vadd.f32 %v768, %v1092
        %v1157 = vadd.f32 %v769, %v1093
        %v1158 = vadd.f32 %v770, %v1094
        %v1159 = vadd.f32 %v771, %v1095
        %v1160 = vadd.f32 %v772, %v1096
        %v1161 = vadd.f32 %v773, %v1097
        %v1162 = vadd.f32 %v774, %v1098
        %v1163 = vadd.f32 %v775, %v1099
        %v1164 = vadd.f32 %v776, %v1100
        %v1165 = vadd.f32 %v777, %v1101
        %v1166 = vadd.f32 %v778, %v1102
        %v1167 = vadd.f32 %v779, %v1103
        %v1168 = vadd.f32 %v780, %v1104
        %v1169 = vadd.f32 %v781, %v1105
        %v1170 = vadd.f32 %v782, %v1106
        %v1171 = vadd.f32 %v783, %v1107
        %v1172 = vadd.f32 %v784, %v1108
        %v1173 = vadd.f32 %v785, %v1109
        %v1174 = vadd.f32 %v786, %v1110
        %v1175 = vadd.f32 %v787, %v1111
        %v1176 = vadd.f32 %v788, %v1112
        %v1177 = vadd.f32 %v789, %v1113
        %v1178 = vadd.f32 %v790, %v1114
        %v1179 = vadd.f32 %v791, %v1115
        %v1180 = vadd.f32 %v792, %v1116
        %v1181 = vadd.f32 %v793, %v1117
        %v1182 = vadd.f32 %v794, %v1118
        %v1183 = vadd.f32 %v795, %v1119
        %v1184 = vadd.f32 %v796, %v1120
        %v1185 = vadd.f32 %v797, %v1121
        %v1186 = vadd.f32 %v798, %v1122
        %v1187 = vadd.f32 %v799, %v1123
        %v1188 = vadd.f32 %v800, %v1124
        %v1189 = vadd.f32 %v801, %v1125
        %v1190 = vadd.f32 %v802, %v1126
        %v1191 = vadd.f32 %v803, %v1127
        %v1192 = vadd.f32 %v804, %v1128
        %v1193 = vadd.f32 %v805, %v1129
        %v1194 = vadd.f32 %v806, %v1130
        %v1195 = vadd.f32 %v807, %v1131
        %v1196 = vadd.f32 %v808, %v1132
        %v1197 = vadd.f32 %v809, %v1133
        %v1198 = vadd.f32 %v810, %v1134
        %v1199 = vadd.f32 %v811, %v1135
        %1200 = vset.pattern.permute.xlu0 2
        %1201 = vperm.xlu0 %1200, %v359
        %v1202 = vpop.permute.xlu0 %1201
        %1204 = vset.pattern.permute.xlu0 2
        %1205 = vperm.xlu0 %1204, %v360
        %v1206 = vpop.permute.xlu0 %1205
        %1208 = vset.pattern.permute.xlu0 2
        %1209 = vperm.xlu0 %1208, %v361
        %v1210 = vpop.permute.xlu0 %1209
        %1212 = vset.pattern.permute.xlu0 2
        %1213 = vperm.xlu0 %1212, %v362
        %v1214 = vpop.permute.xlu0 %1213
        %1216 = vset.pattern.permute.xlu0 2
        %1217 = vperm.xlu0 %1216, %v363
        %v1218 = vpop.permute.xlu0 %1217
        %1220 = vset.pattern.permute.xlu0 2
        %1221 = vperm.xlu0 %1220, %v364
        %v1222 = vpop.permute.xlu0 %1221
        %1224 = vset.pattern.permute.xlu0 2
        %1225 = vperm.xlu0 %1224, %v365
        %v1226 = vpop.permute.xlu0 %1225
        %1228 = vset.pattern.permute.xlu0 2
        %1229 = vperm.xlu0 %1228, %v366
        %v1230 = vpop.permute.xlu0 %1229
        %1232 = vset.pattern.permute.xlu0 2
        %1233 = vperm.xlu0 %1232, %v367
        %v1234 = vpop.permute.xlu0 %1233
        %1236 = vset.pattern.permute.xlu0 2
        %1237 = vperm.xlu0 %1236, %v368
        %v1238 = vpop.permute.xlu0 %1237
        %1240 = vset.pattern.permute.xlu0 2
        %1241 = vperm.xlu0 %1240, %v369
        %v1242 = vpop.permute.xlu0 %1241
        %1244 = vset.pattern.permute.xlu0 2
        %1245 = vperm.xlu0 %1244, %v370
        %v1246 = vpop.permute.xlu0 %1245
        %1248 = vset.pattern.permute.xlu0 2
        %1249 = vperm.xlu0 %1248, %v371
        %v1250 = vpop.permute.xlu0 %1249
        %1252 = vset.pattern.permute.xlu0 2
        %1253 = vperm.xlu0 %1252, %v372
        %v1254 = vpop.permute.xlu0 %1253
        %1256 = vset.pattern.permute.xlu0 2
        %1257 = vperm.xlu0 %1256, %v373
        %v1258 = vpop.permute.xlu0 %1257
        %1260 = vset.pattern.permute.xlu0 2
        %1261 = vperm.xlu0 %1260, %v374
        %v1262 = vpop.permute.xlu0 %1261
        %1264 = vset.pattern.permute.xlu0 2
        %1265 = vperm.xlu0 %1264, %v375
        %v1266 = vpop.permute.xlu0 %1265
        %1268 = vset.pattern.permute.xlu0 2
        %1269 = vperm.xlu0 %1268, %v376
        %v1270 = vpop.permute.xlu0 %1269
        %1272 = vset.pattern.permute.xlu0 2
        %1273 = vperm.xlu0 %1272, %v377
        %v1274 = vpop.permute.xlu0 %1273
        %1276 = vset.pattern.permute.xlu0 2
        %1277 = vperm.xlu0 %1276, %v378
        %v1278 = vpop.permute.xlu0 %1277
        %1280 = vset.pattern.permute.xlu0 2
        %1281 = vperm.xlu0 %1280, %v379
        %v1282 = vpop.permute.xlu0 %1281
        %1284 = vset.pattern.permute.xlu0 2
        %1285 = vperm.xlu0 %1284, %v380
        %v1286 = vpop.permute.xlu0 %1285
        %1288 = vset.pattern.permute.xlu0 2
        %1289 = vperm.xlu0 %1288, %v381
        %v1290 = vpop.permute.xlu0 %1289
        %1292 = vset.pattern.permute.xlu0 2
        %1293 = vperm.xlu0 %1292, %v382
        %v1294 = vpop.permute.xlu0 %1293
        %1296 = vset.pattern.permute.xlu0 2
        %1297 = vperm.xlu0 %1296, %v383
        %v1298 = vpop.permute.xlu0 %1297
        %1300 = vset.pattern.permute.xlu0 2
        %1301 = vperm.xlu0 %1300, %v384
        %v1302 = vpop.permute.xlu0 %1301
        %1304 = vset.pattern.permute.xlu0 2
        %1305 = vperm.xlu0 %1304, %v385
        %v1306 = vpop.permute.xlu0 %1305
        %1308 = vset.pattern.permute.xlu0 2
        %1309 = vperm.xlu0 %1308, %v386
        %v1310 = vpop.permute.xlu0 %1309
        %1312 = vset.pattern.permute.xlu0 2
        %1313 = vperm.xlu0 %1312, %v387
        %v1314 = vpop.permute.xlu0 %1313
        %1316 = vset.pattern.permute.xlu0 2
        %1317 = vperm.xlu0 %1316, %v388
        %v1318 = vpop.permute.xlu0 %1317
        %1320 = vset.pattern.permute.xlu0 2
        %1321 = vperm.xlu0 %1320, %v389
        %v1322 = vpop.permute.xlu0 %1321
        %1324 = vset.pattern.permute.xlu0 2
        %1325 = vperm.xlu0 %1324, %v390
        %v1326 = vpop.permute.xlu0 %1325
        %1328 = vset.pattern.permute.xlu0 2
        %1329 = vperm.xlu0 %1328, %v391
        %v1330 = vpop.permute.xlu0 %1329
        %1332 = vset.pattern.permute.xlu0 2
        %1333 = vperm.xlu0 %1332, %v392
        %v1334 = vpop.permute.xlu0 %1333
        %1336 = vset.pattern.permute.xlu0 2
        %1337 = vperm.xlu0 %1336, %v393
        %v1338 = vpop.permute.xlu0 %1337
        %1340 = vset.pattern.permute.xlu0 2
        %1341 = vperm.xlu0 %1340, %v394
        %v1342 = vpop.permute.xlu0 %1341
        %1344 = vset.pattern.permute.xlu0 2
        %1345 = vperm.xlu0 %1344, %v395
        %v1346 = vpop.permute.xlu0 %1345
        %1348 = vset.pattern.permute.xlu0 2
        %1349 = vperm.xlu0 %1348, %v396
        %v1350 = vpop.permute.xlu0 %1349
        %1352 = vset.pattern.permute.xlu0 2
        %1353 = vperm.xlu0 %1352, %v397
        %v1354 = vpop.permute.xlu0 %1353
        %1356 = vset.pattern.permute.xlu0 2
        %1357 = vperm.xlu0 %1356, %v398
        %v1358 = vpop.permute.xlu0 %1357
        %1360 = vset.pattern.permute.xlu0 2
        %1361 = vperm.xlu0 %1360, %v399
        %v1362 = vpop.permute.xlu0 %1361
        %1364 = vset.pattern.permute.xlu0 2
        %1365 = vperm.xlu0 %1364, %v400
        %v1366 = vpop.permute.xlu0 %1365
        %1368 = vset.pattern.permute.xlu0 2
        %1369 = vperm.xlu0 %1368, %v401
        %v1370 = vpop.permute.xlu0 %1369
        %1372 = vset.pattern.permute.xlu0 2
        %1373 = vperm.xlu0 %1372, %v402
        %v1374 = vpop.permute.xlu0 %1373
        %1376 = vset.pattern.permute.xlu0 2
        %1377 = vperm.xlu0 %1376, %v403
        %v1378 = vpop.permute.xlu0 %1377
        %1380 = vset.pattern.permute.xlu0 2
        %1381 = vperm.xlu0 %1380, %v404
        %v1382 = vpop.permute.xlu0 %1381
        %1384 = vset.pattern.permute.xlu0 2
        %1385 = vperm.xlu0 %1384, %v405
        %v1386 = vpop.permute.xlu0 %1385
        %1388 = vset.pattern.permute.xlu0 2
        %1389 = vperm.xlu0 %1388, %v406
        %v1390 = vpop.permute.xlu0 %1389
        %1392 = vset.pattern.permute.xlu0 2
        %1393 = vperm.xlu0 %1392, %v407
        %v1394 = vpop.permute.xlu0 %1393
        %1396 = vset.pattern.permute.xlu0 2
        %1397 = vperm.xlu0 %1396, %v408
        %v1398 = vpop.permute.xlu0 %1397
        %1400 = vset.pattern.permute.xlu0 2
        %1401 = vperm.xlu0 %1400, %v409
        %v1402 = vpop.permute.xlu0 %1401
        %1404 = vset.pattern.permute.xlu0 2
        %1405 = vperm.xlu0 %1404, %v410
        %v1406 = vpop.permute.xlu0 %1405
        %1408 = vset.pattern.permute.xlu0 2
        %1409 = vperm.xlu0 %1408, %v411
        %v1410 = vpop.permute.xlu0 %1409
        %1412 = vset.pattern.permute.xlu0 2
        %1413 = vperm.xlu0 %1412, %v412
        %v1414 = vpop.permute.xlu0 %1413
        %1416 = vset.pattern.permute.xlu0 2
        %1417 = vperm.xlu0 %1416, %v413
        %v1418 = vpop.permute.xlu0 %1417
        %1420 = vset.pattern.permute.xlu0 2
        %1421 = vperm.xlu0 %1420, %v414
        %v1422 = vpop.permute.xlu0 %1421
        %1424 = vset.pattern.permute.xlu0 2
        %1425 = vperm.xlu0 %1424, %v415
        %v1426 = vpop.permute.xlu0 %1425
        %1428 = vset.pattern.permute.xlu0 2
        %1429 = vperm.xlu0 %1428, %v416
        %v1430 = vpop.permute.xlu0 %1429
        %1432 = vset.pattern.permute.xlu0 2
        %1433 = vperm.xlu0 %1432, %v417
        %v1434 = vpop.permute.xlu0 %1433
        %1436 = vset.pattern.permute.xlu0 2
        %1437 = vperm.xlu0 %1436, %v418
        %v1438 = vpop.permute.xlu0 %1437
        %1440 = vset.pattern.permute.xlu0 2
        %1441 = vperm.xlu0 %1440, %v419
        %v1442 = vpop.permute.xlu0 %1441
        %1444 = vset.pattern.permute.xlu0 2
        %1445 = vperm.xlu0 %1444, %v420
        %v1446 = vpop.permute.xlu0 %1445
        %1448 = vset.pattern.permute.xlu0 2
        %1449 = vperm.xlu0 %1448, %v421
        %v1450 = vpop.permute.xlu0 %1449
        %1452 = vset.pattern.permute.xlu0 2
        %1453 = vperm.xlu0 %1452, %v422
        %v1454 = vpop.permute.xlu0 %1453
        %v1456 = vlaneseq
        %v1457 = vshrl.u32 %v1456, 7
        %v1458 = vsub.s32 2, %v1457
        %v1459 = vrot.slane %v423, %v1458
        %v1460 = vmul.f32 %v1202, %v1459
        %v1461 = vmul.f32 %v1206, %v1459
        %v1462 = vmul.f32 %v1210, %v1459
        %v1463 = vmul.f32 %v1214, %v1459
        %v1464 = vmul.f32 %v1218, %v1459
        %v1465 = vmul.f32 %v1222, %v1459
        %v1466 = vmul.f32 %v1226, %v1459
        %v1467 = vmul.f32 %v1230, %v1459
        %v1468 = vmul.f32 %v1234, %v1459
        %v1469 = vmul.f32 %v1238, %v1459
        %v1470 = vmul.f32 %v1242, %v1459
        %v1471 = vmul.f32 %v1246, %v1459
        %v1472 = vmul.f32 %v1250, %v1459
        %v1473 = vmul.f32 %v1254, %v1459
        %v1474 = vmul.f32 %v1258, %v1459
        %v1475 = vmul.f32 %v1262, %v1459
        %v1476 = vmul.f32 %v1266, %v1459
        %v1477 = vmul.f32 %v1270, %v1459
        %v1478 = vmul.f32 %v1274, %v1459
        %v1479 = vmul.f32 %v1278, %v1459
        %v1480 = vmul.f32 %v1282, %v1459
        %v1481 = vmul.f32 %v1286, %v1459
        %v1482 = vmul.f32 %v1290, %v1459
        %v1483 = vmul.f32 %v1294, %v1459
        %v1484 = vmul.f32 %v1298, %v1459
        %v1485 = vmul.f32 %v1302, %v1459
        %v1486 = vmul.f32 %v1306, %v1459
        %v1487 = vmul.f32 %v1310, %v1459
        %v1488 = vmul.f32 %v1314, %v1459
        %v1489 = vmul.f32 %v1318, %v1459
        %v1490 = vmul.f32 %v1322, %v1459
        %v1491 = vmul.f32 %v1326, %v1459
        %v1492 = vmul.f32 %v1330, %v1459
        %v1493 = vmul.f32 %v1334, %v1459
        %v1494 = vmul.f32 %v1338, %v1459
        %v1495 = vmul.f32 %v1342, %v1459
        %v1496 = vmul.f32 %v1346, %v1459
        %v1497 = vmul.f32 %v1350, %v1459
        %v1498 = vmul.f32 %v1354, %v1459
        %v1499 = vmul.f32 %v1358, %v1459
        %v1500 = vmul.f32 %v1362, %v1459
        %v1501 = vmul.f32 %v1366, %v1459
        %v1502 = vmul.f32 %v1370, %v1459
        %v1503 = vmul.f32 %v1374, %v1459
        %v1504 = vmul.f32 %v1378, %v1459
        %v1505 = vmul.f32 %v1382, %v1459
        %v1506 = vmul.f32 %v1386, %v1459
        %v1507 = vmul.f32 %v1390, %v1459
        %v1508 = vmul.f32 %v1394, %v1459
        %v1509 = vmul.f32 %v1398, %v1459
        %v1510 = vmul.f32 %v1402, %v1459
        %v1511 = vmul.f32 %v1406, %v1459
        %v1512 = vmul.f32 %v1410, %v1459
        %v1513 = vmul.f32 %v1414, %v1459
        %v1514 = vmul.f32 %v1418, %v1459
        %v1515 = vmul.f32 %v1422, %v1459
        %v1516 = vmul.f32 %v1426, %v1459
        %v1517 = vmul.f32 %v1430, %v1459
        %v1518 = vmul.f32 %v1434, %v1459
        %v1519 = vmul.f32 %v1438, %v1459
        %v1520 = vmul.f32 %v1442, %v1459
        %v1521 = vmul.f32 %v1446, %v1459
        %v1522 = vmul.f32 %v1450, %v1459
        %v1523 = vmul.f32 %v1454, %v1459
        %v1524 = vadd.f32 %v1136, %v1460
        %v1525 = vadd.f32 %v1137, %v1461
        %v1526 = vadd.f32 %v1138, %v1462
        %v1527 = vadd.f32 %v1139, %v1463
        %v1528 = vadd.f32 %v1140, %v1464
        %v1529 = vadd.f32 %v1141, %v1465
        %v1530 = vadd.f32 %v1142, %v1466
        %v1531 = vadd.f32 %v1143, %v1467
        %v1532 = vadd.f32 %v1144, %v1468
        %v1533 = vadd.f32 %v1145, %v1469
        %v1534 = vadd.f32 %v1146, %v1470
        %v1535 = vadd.f32 %v1147, %v1471
        %v1536 = vadd.f32 %v1148, %v1472
        %v1537 = vadd.f32 %v1149, %v1473
        %v1538 = vadd.f32 %v1150, %v1474
        %v1539 = vadd.f32 %v1151, %v1475
        %v1540 = vadd.f32 %v1152, %v1476
        %v1541 = vadd.f32 %v1153, %v1477
        %v1542 = vadd.f32 %v1154, %v1478
        %v1543 = vadd.f32 %v1155, %v1479
        %v1544 = vadd.f32 %v1156, %v1480
        %v1545 = vadd.f32 %v1157, %v1481
        %v1546 = vadd.f32 %v1158, %v1482
        %v1547 = vadd.f32 %v1159, %v1483
        %v1548 = vadd.f32 %v1160, %v1484
        %v1549 = vadd.f32 %v1161, %v1485
        %v1550 = vadd.f32 %v1162, %v1486
        %v1551 = vadd.f32 %v1163, %v1487
        %v1552 = vadd.f32 %v1164, %v1488
        %v1553 = vadd.f32 %v1165, %v1489
        %v1554 = vadd.f32 %v1166, %v1490
        %v1555 = vadd.f32 %v1167, %v1491
        %v1556 = vadd.f32 %v1168, %v1492
        %v1557 = vadd.f32 %v1169, %v1493
        %v1558 = vadd.f32 %v1170, %v1494
        %v1559 = vadd.f32 %v1171, %v1495
        %v1560 = vadd.f32 %v1172, %v1496
        %v1561 = vadd.f32 %v1173, %v1497
        %v1562 = vadd.f32 %v1174, %v1498
        %v1563 = vadd.f32 %v1175, %v1499
        %v1564 = vadd.f32 %v1176, %v1500
        %v1565 = vadd.f32 %v1177, %v1501
        %v1566 = vadd.f32 %v1178, %v1502
        %v1567 = vadd.f32 %v1179, %v1503
        %v1568 = vadd.f32 %v1180, %v1504
        %v1569 = vadd.f32 %v1181, %v1505
        %v1570 = vadd.f32 %v1182, %v1506
        %v1571 = vadd.f32 %v1183, %v1507
        %v1572 = vadd.f32 %v1184, %v1508
        %v1573 = vadd.f32 %v1185, %v1509
        %v1574 = vadd.f32 %v1186, %v1510
        %v1575 = vadd.f32 %v1187, %v1511
        %v1576 = vadd.f32 %v1188, %v1512
        %v1577 = vadd.f32 %v1189, %v1513
        %v1578 = vadd.f32 %v1190, %v1514
        %v1579 = vadd.f32 %v1191, %v1515
        %v1580 = vadd.f32 %v1192, %v1516
        %v1581 = vadd.f32 %v1193, %v1517
        %v1582 = vadd.f32 %v1194, %v1518
        %v1583 = vadd.f32 %v1195, %v1519
        %v1584 = vadd.f32 %v1196, %v1520
        %v1585 = vadd.f32 %v1197, %v1521
        %v1586 = vadd.f32 %v1198, %v1522
        %v1587 = vadd.f32 %v1199, %v1523
        %v1588 = vld [vmem:[%s2] sm:$0x1]
        %v1590 = vlaneseq
        %v1591 = vshrl.u32 %v1590, 7
        %v1592 = vsub.s32 0, %v1591
        %v1593 = vrot.slane %v1588, %v1592
        %v1595 = vadd.f32 %v1524, %v1593
        %v1596 = vadd.f32 %v1525, %v1593
        %v1597 = vadd.f32 %v1526, %v1593
        %v1598 = vadd.f32 %v1527, %v1593
        %v1599 = vadd.f32 %v1528, %v1593
        %v1600 = vadd.f32 %v1529, %v1593
        %v1601 = vadd.f32 %v1530, %v1593
        %v1602 = vadd.f32 %v1531, %v1593
        %v1603 = vadd.f32 %v1532, %v1593
        %v1604 = vadd.f32 %v1533, %v1593
        %v1605 = vadd.f32 %v1534, %v1593
        %v1606 = vadd.f32 %v1535, %v1593
        %v1607 = vadd.f32 %v1536, %v1593
        %v1608 = vadd.f32 %v1537, %v1593
        %v1609 = vadd.f32 %v1538, %v1593
        %v1610 = vadd.f32 %v1539, %v1593
        %v1611 = vadd.f32 %v1540, %v1593
        %v1612 = vadd.f32 %v1541, %v1593
        %v1613 = vadd.f32 %v1542, %v1593
        %v1614 = vadd.f32 %v1543, %v1593
        %v1615 = vadd.f32 %v1544, %v1593
        %v1616 = vadd.f32 %v1545, %v1593
        %v1617 = vadd.f32 %v1546, %v1593
        %v1618 = vadd.f32 %v1547, %v1593
        %v1619 = vadd.f32 %v1548, %v1593
        %v1620 = vadd.f32 %v1549, %v1593
        %v1621 = vadd.f32 %v1550, %v1593
        %v1622 = vadd.f32 %v1551, %v1593
        %v1623 = vadd.f32 %v1552, %v1593
        %v1624 = vadd.f32 %v1553, %v1593
        %v1625 = vadd.f32 %v1554, %v1593
        %v1626 = vadd.f32 %v1555, %v1593
        %v1627 = vadd.f32 %v1556, %v1593
        %v1628 = vadd.f32 %v1557, %v1593
        %v1629 = vadd.f32 %v1558, %v1593
        %v1630 = vadd.f32 %v1559, %v1593
        %v1631 = vadd.f32 %v1560, %v1593
        %v1632 = vadd.f32 %v1561, %v1593
        %v1633 = vadd.f32 %v1562, %v1593
        %v1634 = vadd.f32 %v1563, %v1593
        %v1635 = vadd.f32 %v1564, %v1593
        %v1636 = vadd.f32 %v1565, %v1593
        %v1637 = vadd.f32 %v1566, %v1593
        %v1638 = vadd.f32 %v1567, %v1593
        %v1639 = vadd.f32 %v1568, %v1593
        %v1640 = vadd.f32 %v1569, %v1593
        %v1641 = vadd.f32 %v1570, %v1593
        %v1642 = vadd.f32 %v1571, %v1593
        %v1643 = vadd.f32 %v1572, %v1593
        %v1644 = vadd.f32 %v1573, %v1593
        %v1645 = vadd.f32 %v1574, %v1593
        %v1646 = vadd.f32 %v1575, %v1593
        %v1647 = vadd.f32 %v1576, %v1593
        %v1648 = vadd.f32 %v1577, %v1593
        %v1649 = vadd.f32 %v1578, %v1593
        %v1650 = vadd.f32 %v1579, %v1593
        %v1651 = vadd.f32 %v1580, %v1593
        %v1652 = vadd.f32 %v1581, %v1593
        %v1653 = vadd.f32 %v1582, %v1593
        %v1654 = vadd.f32 %v1583, %v1593
        %v1655 = vadd.f32 %v1584, %v1593
        %v1656 = vadd.f32 %v1585, %v1593
        %v1657 = vadd.f32 %v1586, %v1593
        %v1658 = vadd.f32 %v1587, %v1593
        %v1659 = vmax.f32 %v1595, 0.0
        %v1660 = vmax.f32 %v1596, 0.0
        %v1661 = vmax.f32 %v1597, 0.0
        %v1662 = vmax.f32 %v1598, 0.0
        %v1663 = vmax.f32 %v1599, 0.0
        %v1664 = vmax.f32 %v1600, 0.0
        %v1665 = vmax.f32 %v1601, 0.0
        %v1666 = vmax.f32 %v1602, 0.0
        %v1667 = vmax.f32 %v1603, 0.0
        %v1668 = vmax.f32 %v1604, 0.0
        %v1669 = vmax.f32 %v1605, 0.0
        %v1670 = vmax.f32 %v1606, 0.0
        %v1671 = vmax.f32 %v1607, 0.0
        %v1672 = vmax.f32 %v1608, 0.0
        %v1673 = vmax.f32 %v1609, 0.0
        %v1674 = vmax.f32 %v1610, 0.0
        %v1675 = vmax.f32 %v1611, 0.0
        %v1676 = vmax.f32 %v1612, 0.0
        %v1677 = vmax.f32 %v1613, 0.0
        %v1678 = vmax.f32 %v1614, 0.0
        %v1679 = vmax.f32 %v1615, 0.0
        %v1680 = vmax.f32 %v1616, 0.0
        %v1681 = vmax.f32 %v1617, 0.0
        %v1682 = vmax.f32 %v1618, 0.0
        %v1683 = vmax.f32 %v1619, 0.0
        %v1684 = vmax.f32 %v1620, 0.0
        %v1685 = vmax.f32 %v1621, 0.0
        %v1686 = vmax.f32 %v1622, 0.0
        %v1687 = vmax.f32 %v1623, 0.0
        %v1688 = vmax.f32 %v1624, 0.0
        %v1689 = vmax.f32 %v1625, 0.0
        %v1690 = vmax.f32 %v1626, 0.0
        %v1691 = vmax.f32 %v1627, 0.0
        %v1692 = vmax.f32 %v1628, 0.0
        %v1693 = vmax.f32 %v1629, 0.0
        %v1694 = vmax.f32 %v1630, 0.0
        %v1695 = vmax.f32 %v1631, 0.0
        %v1696 = vmax.f32 %v1632, 0.0
        %v1697 = vmax.f32 %v1633, 0.0
        %v1698 = vmax.f32 %v1634, 0.0
        %v1699 = vmax.f32 %v1635, 0.0
        %v1700 = vmax.f32 %v1636, 0.0
        %v1701 = vmax.f32 %v1637, 0.0
        %v1702 = vmax.f32 %v1638, 0.0
        %v1703 = vmax.f32 %v1639, 0.0
        %v1704 = vmax.f32 %v1640, 0.0
        %v1705 = vmax.f32 %v1641, 0.0
        %v1706 = vmax.f32 %v1642, 0.0
        %v1707 = vmax.f32 %v1643, 0.0
        %v1708 = vmax.f32 %v1644, 0.0
        %v1709 = vmax.f32 %v1645, 0.0
        %v1710 = vmax.f32 %v1646, 0.0
        %v1711 = vmax.f32 %v1647, 0.0
        %v1712 = vmax.f32 %v1648, 0.0
        %v1713 = vmax.f32 %v1649, 0.0
        %v1714 = vmax.f32 %v1650, 0.0
        %v1715 = vmax.f32 %v1651, 0.0
        %v1716 = vmax.f32 %v1652, 0.0
        %v1717 = vmax.f32 %v1653, 0.0
        %v1718 = vmax.f32 %v1654, 0.0
        %v1719 = vmax.f32 %v1655, 0.0
        %v1720 = vmax.f32 %v1656, 0.0
        %v1721 = vmax.f32 %v1657, 0.0
        %v1722 = vmax.f32 %v1658, 0.0
        %1723 = vxpose.xlu0.b32.start [1/16] %v1659, 128
        %1724 = vxpose.xlu0.b32.cont [2/16] %v1660, 128
        %1725 = vxpose.xlu0.b32.cont [3/16] %v1661, 128
        %1726 = vxpose.xlu0.b32.cont [4/16] %v1662, 128
        %1727 = vxpose.xlu0.b32.cont [5/16] %v1663, 128
        %1728 = vxpose.xlu0.b32.cont [6/16] %v1664, 128
        %1729 = vxpose.xlu0.b32.cont [7/16] %v1665, 128
        %1730 = vxpose.xlu0.b32.cont [8/16] %v1666, 128
        %1731 = vxpose.xlu0.b32.cont [9/16] %v1667, 128
        %1732 = vxpose.xlu0.b32.cont [10/16] %v1668, 128
        %1733 = vxpose.xlu0.b32.cont [11/16] %v1669, 128
        %1734 = vxpose.xlu0.b32.cont [12/16] %v1670, 128
        %1735 = vxpose.xlu0.b32.cont [13/16] %v1671, 128
        %1736 = vxpose.xlu0.b32.cont [14/16] %v1672, 128
        %1737 = vxpose.xlu0.b32.cont [15/16] %v1673, 128
        %1738 = vxpose.xlu0.b32.end [16/16] %v1674, 128
        %v1739 = vpop.trf.xlu0
        %v1740 = vpop.trf.xlu0
        %v1741 = vpop.trf.xlu0
        %v1742 = vpop.trf.xlu0
        %v1743 = vpop.trf.xlu0
        %v1744 = vpop.trf.xlu0
        %v1745 = vpop.trf.xlu0
        %v1746 = vpop.trf.xlu0
        %v1747 = vpop.trf.xlu0
        %v1748 = vpop.trf.xlu0
        %v1749 = vpop.trf.xlu0
        %v1750 = vpop.trf.xlu0
        %v1751 = vpop.trf.xlu0
        %v1752 = vpop.trf.xlu0
        %v1753 = vpop.trf.xlu0
        %v1754 = vpop.trf.xlu0
        %1755 = vxpose.xlu0.b32.start [1/16] %v1675, 128
        %1756 = vxpose.xlu0.b32.cont [2/16] %v1676, 128
        %1757 = vxpose.xlu0.b32.cont [3/16] %v1677, 128
        %1758 = vxpose.xlu0.b32.cont [4/16] %v1678, 128
        %1759 = vxpose.xlu0.b32.cont [5/16] %v1679, 128
        %1760 = vxpose.xlu0.b32.cont [6/16] %v1680, 128
        %1761 = vxpose.xlu0.b32.cont [7/16] %v1681, 128
        %1762 = vxpose.xlu0.b32.cont [8/16] %v1682, 128
        %1763 = vxpose.xlu0.b32.cont [9/16] %v1683, 128
        %1764 = vxpose.xlu0.b32.cont [10/16] %v1684, 128
        %1765 = vxpose.xlu0.b32.cont [11/16] %v1685, 128
        %1766 = vxpose.xlu0.b32.cont [12/16] %v1686, 128
        %1767 = vxpose.xlu0.b32.cont [13/16] %v1687, 128
        %1768 = vxpose.xlu0.b32.cont [14/16] %v1688, 128
        %1769 = vxpose.xlu0.b32.cont [15/16] %v1689, 128
        %1770 = vxpose.xlu0.b32.end [16/16] %v1690, 128
        %v1771 = vpop.trf.xlu0
        %v1772 = vpop.trf.xlu0
        %v1773 = vpop.trf.xlu0
        %v1774 = vpop.trf.xlu0
        %v1775 = vpop.trf.xlu0
        %v1776 = vpop.trf.xlu0
        %v1777 = vpop.trf.xlu0
        %v1778 = vpop.trf.xlu0
        %v1779 = vpop.trf.xlu0
        %v1780 = vpop.trf.xlu0
        %v1781 = vpop.trf.xlu0
        %v1782 = vpop.trf.xlu0
        %v1783 = vpop.trf.xlu0
        %v1784 = vpop.trf.xlu0
        %v1785 = vpop.trf.xlu0
        %v1786 = vpop.trf.xlu0
        %1787 = vxpose.xlu0.b32.start [1/16] %v1691, 128
        %1788 = vxpose.xlu0.b32.cont [2/16] %v1692, 128
        %1789 = vxpose.xlu0.b32.cont [3/16] %v1693, 128
        %1790 = vxpose.xlu0.b32.cont [4/16] %v1694, 128
        %1791 = vxpose.xlu0.b32.cont [5/16] %v1695, 128
        %1792 = vxpose.xlu0.b32.cont [6/16] %v1696, 128
        %1793 = vxpose.xlu0.b32.cont [7/16] %v1697, 128
        %1794 = vxpose.xlu0.b32.cont [8/16] %v1698, 128
        %1795 = vxpose.xlu0.b32.cont [9/16] %v1699, 128
        %1796 = vxpose.xlu0.b32.cont [10/16] %v1700, 128
        %1797 = vxpose.xlu0.b32.cont [11/16] %v1701, 128
        %1798 = vxpose.xlu0.b32.cont [12/16] %v1702, 128
        %1799 = vxpose.xlu0.b32.cont [13/16] %v1703, 128
        %1800 = vxpose.xlu0.b32.cont [14/16] %v1704, 128
        %1801 = vxpose.xlu0.b32.cont [15/16] %v1705, 128
        %1802 = vxpose.xlu0.b32.end [16/16] %v1706, 128
        %v1803 = vpop.trf.xlu0
        %v1804 = vpop.trf.xlu0
        %v1805 = vpop.trf.xlu0
        %v1806 = vpop.trf.xlu0
        %v1807 = vpop.trf.xlu0
        %v1808 = vpop.trf.xlu0
        %v1809 = vpop.trf.xlu0
        %v1810 = vpop.trf.xlu0
        %v1811 = vpop.trf.xlu0
        %v1812 = vpop.trf.xlu0
        %v1813 = vpop.trf.xlu0
        %v1814 = vpop.trf.xlu0
        %v1815 = vpop.trf.xlu0
        %v1816 = vpop.trf.xlu0
        %v1817 = vpop.trf.xlu0
        %v1818 = vpop.trf.xlu0
        %1819 = vxpose.xlu0.b32.start [1/16] %v1707, 128
        %1820 = vxpose.xlu0.b32.cont [2/16] %v1708, 128
        %1821 = vxpose.xlu0.b32.cont [3/16] %v1709, 128
        %1822 = vxpose.xlu0.b32.cont [4/16] %v1710, 128
        %1823 = vxpose.xlu0.b32.cont [5/16] %v1711, 128
        %1824 = vxpose.xlu0.b32.cont [6/16] %v1712, 128
        %1825 = vxpose.xlu0.b32.cont [7/16] %v1713, 128
        %1826 = vxpose.xlu0.b32.cont [8/16] %v1714, 128
        %1827 = vxpose.xlu0.b32.cont [9/16] %v1715, 128
        %1828 = vxpose.xlu0.b32.cont [10/16] %v1716, 128
        %1829 = vxpose.xlu0.b32.cont [11/16] %v1717, 128
        %1830 = vxpose.xlu0.b32.cont [12/16] %v1718, 128
        %1831 = vxpose.xlu0.b32.cont [13/16] %v1719, 128
        %1832 = vxpose.xlu0.b32.cont [14/16] %v1720, 128
        %1833 = vxpose.xlu0.b32.cont [15/16] %v1721, 128
        %1834 = vxpose.xlu0.b32.end [16/16] %v1722, 128
        %v1835 = vpop.trf.xlu0
        %v1836 = vpop.trf.xlu0
        %v1837 = vpop.trf.xlu0
        %v1838 = vpop.trf.xlu0
        %v1839 = vpop.trf.xlu0
        %v1840 = vpop.trf.xlu0
        %v1841 = vpop.trf.xlu0
        %v1842 = vpop.trf.xlu0
        %v1843 = vpop.trf.xlu0
        %v1844 = vpop.trf.xlu0
        %v1845 = vpop.trf.xlu0
        %v1846 = vpop.trf.xlu0
        %v1847 = vpop.trf.xlu0
        %v1848 = vpop.trf.xlu0
        %v1849 = vpop.trf.xlu0
        %v1850 = vpop.trf.xlu0
        %1851 = vst [vmem:[%s326] sm:$0xff] %v1739
        %1852 = vst [vmem:[%s326 + $0x8] sm:$0xff] %v1771
        %1853 = vst [vmem:[%s326 + $0x10] sm:$0xff] %v1803
        %1854 = vst [vmem:[%s326 + $0x18] sm:$0xff] %v1835
        %1855 = vst [vmem:[%s326 + $0x20] sm:$0xff] %v1740
        %1856 = vst [vmem:[%s326 + $0x28] sm:$0xff] %v1772
        %1857 = vst [vmem:[%s326 + $0x30] sm:$0xff] %v1804
        %1858 = vst [vmem:[%s326 + $0x38] sm:$0xff] %v1836
        %1859 = vst [vmem:[%s326 + $0x40] sm:$0xff] %v1741
        %1860 = vst [vmem:[%s326 + $0x48] sm:$0xff] %v1773
        %1861 = vst [vmem:[%s326 + $0x50] sm:$0xff] %v1805
        %1862 = vst [vmem:[%s326 + $0x58] sm:$0xff] %v1837
        %1863 = vst [vmem:[%s326 + $0x60] sm:$0xff] %v1742
        %1864 = vst [vmem:[%s326 + $0x68] sm:$0xff] %v1774
        %1865 = vst [vmem:[%s326 + $0x70] sm:$0xff] %v1806
        %1866 = vst [vmem:[%s326 + $0x78] sm:$0xff] %v1838
        %1867 = vst [vmem:[%s326 + $0x80] sm:$0xff] %v1743
        %1868 = vst [vmem:[%s326 + $0x88] sm:$0xff] %v1775
        %1869 = vst [vmem:[%s326 + $0x90] sm:$0xff] %v1807
        %1870 = vst [vmem:[%s326 + $0x98] sm:$0xff] %v1839
        %1871 = vst [vmem:[%s326 + $0xa0] sm:$0xff] %v1744
        %1872 = vst [vmem:[%s326 + $0xa8] sm:$0xff] %v1776
        %1873 = vst [vmem:[%s326 + $0xb0] sm:$0xff] %v1808
        %1874 = vst [vmem:[%s326 + $0xb8] sm:$0xff] %v1840
        %1875 = vst [vmem:[%s326 + $0xc0] sm:$0xff] %v1745
        %1876 = vst [vmem:[%s326 + $0xc8] sm:$0xff] %v1777
        %1877 = vst [vmem:[%s326 + $0xd0] sm:$0xff] %v1809
        %1878 = vst [vmem:[%s326 + $0xd8] sm:$0xff] %v1841
        %1879 = vst [vmem:[%s326 + $0xe0] sm:$0xff] %v1746
        %1880 = vst [vmem:[%s326 + $0xe8] sm:$0xff] %v1778
        %1881 = vst [vmem:[%s326 + $0xf0] sm:$0xff] %v1810
        %1882 = vst [vmem:[%s326 + $0xf8] sm:$0xff] %v1842
        %v1883 = vld [vmem:[%s3] sm:$0xff]
        %v1884 = vld [vmem:[%s3 + $0x8] sm:$0xff]
        %v1885 = vld [vmem:[%s3 + $0x10] sm:$0xff]
        %v1886 = vld [vmem:[%s3 + $0x18] sm:$0xff]
        %v1887 = vld [vmem:[%s3 + $0x20] sm:$0xff]
        %v1888 = vld [vmem:[%s3 + $0x28] sm:$0xff]
        %v1889 = vld [vmem:[%s3 + $0x30] sm:$0xff]
        %v1890 = vld [vmem:[%s3 + $0x38] sm:$0xff]
        %v1891 = vld [vmem:[%s4] sm:$0x1]
        %v1893 = vlaneseq
        %v1894 = vshrl.u32 %v1893, 7
        %v1895 = vsub.s32 0, %v1894
        %v1896 = vrot.slane %v1891, %v1895
        %vm1898 = vcmask 523264
        %v1900 = vsel %vm1898, %v1659, 0
        %v1903 = vsel %vm1898, %v1660, 0
        %v1906 = vsel %vm1898, %v1661, 0
        %v1909 = vsel %vm1898, %v1662, 0
        %v1912 = vsel %vm1898, %v1663, 0
        %v1915 = vsel %vm1898, %v1664, 0
        %v1918 = vsel %vm1898, %v1665, 0
        %v1921 = vsel %vm1898, %v1666, 0
        %v1924 = vsel %vm1898, %v1667, 0
        %v1927 = vsel %vm1898, %v1668, 0
        %v1930 = vsel %vm1898, %v1669, 0
        %v1933 = vsel %vm1898, %v1670, 0
        %v1936 = vsel %vm1898, %v1671, 0
        %v1939 = vsel %vm1898, %v1672, 0
        %v1942 = vsel %vm1898, %v1673, 0
        %v1945 = vsel %vm1898, %v1674, 0
        %v1948 = vsel %vm1898, %v1675, 0
        %v1951 = vsel %vm1898, %v1676, 0
        %v1954 = vsel %vm1898, %v1677, 0
        %v1957 = vsel %vm1898, %v1678, 0
        %v1960 = vsel %vm1898, %v1679, 0
        %v1963 = vsel %vm1898, %v1680, 0
        %v1966 = vsel %vm1898, %v1681, 0
        %v1969 = vsel %vm1898, %v1682, 0
        %v1972 = vsel %vm1898, %v1683, 0
        %v1975 = vsel %vm1898, %v1684, 0
        %v1978 = vsel %vm1898, %v1685, 0
        %v1981 = vsel %vm1898, %v1686, 0
        %v1984 = vsel %vm1898, %v1687, 0
        %v1987 = vsel %vm1898, %v1688, 0
        %v1990 = vsel %vm1898, %v1689, 0
        %v1993 = vsel %vm1898, %v1690, 0
        %v1996 = vsel %vm1898, %v1691, 0
        %v1999 = vsel %vm1898, %v1692, 0
        %v2002 = vsel %vm1898, %v1693, 0
        %v2005 = vsel %vm1898, %v1694, 0
        %v2008 = vsel %vm1898, %v1695, 0
        %v2011 = vsel %vm1898, %v1696, 0
        %v2014 = vsel %vm1898, %v1697, 0
        %v2017 = vsel %vm1898, %v1698, 0
        %v2020 = vsel %vm1898, %v1699, 0
        %v2023 = vsel %vm1898, %v1700, 0
        %v2026 = vsel %vm1898, %v1701, 0
        %v2029 = vsel %vm1898, %v1702, 0
        %v2032 = vsel %vm1898, %v1703, 0
        %v2035 = vsel %vm1898, %v1704, 0
        %v2038 = vsel %vm1898, %v1705, 0
        %v2041 = vsel %vm1898, %v1706, 0
        %v2044 = vsel %vm1898, %v1707, 0
        %v2047 = vsel %vm1898, %v1708, 0
        %v2050 = vsel %vm1898, %v1709, 0
        %v2053 = vsel %vm1898, %v1710, 0
        %v2056 = vsel %vm1898, %v1711, 0
        %v2059 = vsel %vm1898, %v1712, 0
        %v2062 = vsel %vm1898, %v1713, 0
        %v2065 = vsel %vm1898, %v1714, 0
        %v2068 = vsel %vm1898, %v1715, 0
        %v2071 = vsel %vm1898, %v1716, 0
        %v2074 = vsel %vm1898, %v1717, 0
        %v2077 = vsel %vm1898, %v1718, 0
        %v2080 = vsel %vm1898, %v1719, 0
        %v2083 = vsel %vm1898, %v1720, 0
        %v2086 = vsel %vm1898, %v1721, 0
        %v2089 = vsel %vm1898, %v1722, 0
        %2091 = vmatprep.subr.mxu0 0.0
        %2092 = vmatpush1.msra.mxu0 %v1883
        %2093 = vmatprep.subr.mxu0 0.0
        %2094 = vmatpush1.msra.mxu0 %v1884
        %2095 = vmatprep.subr.mxu0 0.0
        %2096 = vmatpush1.msra.mxu0 %v1885
        %2097 = vmatprep.subr.mxu0 0.0
        %2098 = vmatpush1.msra.mxu0 %v1886
        %2099 = vmatprep.subr.mxu0 0.0
        %2100 = vmatpush1.msra.mxu0 %v1887
        %2101 = vmatprep.subr.mxu0 0.0
        %2102 = vmatpush1.msra.mxu0 %v1888
        %2103 = vmatprep.subr.mxu0 0.0
        %2104 = vmatpush1.msra.mxu0 %v1889
        %2105 = vmatprep.subr.mxu0 0.0
        %2106 = vmatpush1.msra.mxu0 %v1890
        %2107 = vmatprep.subr.mxu0 0.0
        %2108 = vmatpush1.msra.mxu0 0.0
        %2109 = vmatprep.subr.mxu0 0.0
        %2110 = vmatpush1.msra.mxu0 0.0
        %2111 = vmatprep.subr.mxu0 0.0
        %2112 = vmatpush1.msra.mxu0 0.0
        %2113 = vmatprep.subr.mxu0 0.0
        %2114 = vmatpush1.msra.mxu0 0.0
        %2115 = vmatprep.subr.mxu0 0.0
        %2116 = vmatpush1.msra.mxu0 0.0
        %2117 = vmatprep.subr.mxu0 0.0
        %2118 = vmatpush1.msra.mxu0 0.0
        %2119 = vmatprep.subr.mxu0 0.0
        %2120 = vmatpush1.msra.mxu0 0.0
        %2121 = vmatprep.subr.mxu0 0.0
        %2122 = vmatpush1.msra.mxu0 0.0
        %2123 = vmatprep.subr.mxu0 0.0
        %2124 = vmatpush1.msra.mxu0 0.0
        %2125 = vmatprep.subr.mxu0 0.0
        %2126 = vmatpush1.msra.mxu0 0.0
        %2127 = vmatprep.subr.mxu0 0.0
        %2128 = vmatpush1.msra.mxu0 0.0
        %2129 = vmatprep.subr.mxu0 0.0
        %2130 = vmatpush1.msra.mxu0 0.0
        %2131 = vmatprep.subr.mxu0 0.0
        %2132 = vmatpush1.msra.mxu0 0.0
        %2133 = vmatprep.subr.mxu0 0.0
        %2134 = vmatpush1.msra.mxu0 0.0
        %2135 = vmatprep.subr.mxu0 0.0
        %2136 = vmatpush1.msra.mxu0 0.0
        %2137 = vmatprep.subr.mxu0 0.0
        %2138 = vmatpush1.msra.mxu0 0.0
        %2139 = vmatprep.subr.mxu0 0.0
        %2140 = vmatpush1.msra.mxu0 0.0
        %2141 = vmatprep.subr.mxu0 0.0
        %2142 = vmatpush1.msra.mxu0 0.0
        %2143 = vmatprep.subr.mxu0 0.0
        %2144 = vmatpush1.msra.mxu0 0.0
        %2145 = vmatprep.subr.mxu0 0.0
        %2146 = vmatpush1.msra.mxu0 0.0
        %2147 = vmatprep.subr.mxu0 0.0
        %2148 = vmatpush1.msra.mxu0 0.0
        %2149 = vmatprep.subr.mxu0 0.0
        %2150 = vmatpush1.msra.mxu0 0.0
        %2151 = vmatprep.subr.mxu0 0.0
        %2152 = vmatpush1.msra.mxu0 0.0
        %2153 = vmatprep.subr.mxu0 0.0
        %2154 = vmatpush1.msra.mxu0 0.0
        %2155 = vmatprep.mubr.f32.mxu0 0.0
        %2156 = vmatmul.mubr.f32.gmra.mrb[0].mxu0 %v1900
        %v2157 = vpop.f32.mrb[0].mxu0
        %v2158 = vadd.f32 %v1896, %v2157
        %v2159 = vpop.f32.mrb[0].mxu0
        %2160 = vmatprep.mubr.f32.mxu0 0.0
        %2161 = vmatmul.mubr.f32.gmra.mrb[0].mxu0 %v1903
        %v2162 = vpop.f32.mrb[0].mxu0
        %v2163 = vadd.f32 %v1896, %v2162
        %v2164 = vpop.f32.mrb[0].mxu0
        %2165 = vmatprep.mubr.f32.mxu0 0.0
        %2166 = vmatmul.mubr.f32.gmra.mrb[0].mxu0 %v1906
        %v2167 = vpop.f32.mrb[0].mxu0
        %v2168 = vadd.f32 %v1896, %v2167
        %v2169 = vpop.f32.mrb[0].mxu0
        %2170 = vmatprep.mubr.f32.mxu0 0.0
        %2171 = vmatmul.mubr.f32.gmra.mrb[0].mxu0 %v1909
        %v2172 = vpop.f32.mrb[0].mxu0
        %v2173 = vadd.f32 %v1896, %v2172
        %v2174 = vpop.f32.mrb[0].mxu0
        %2175 = vmatprep.mubr.f32.mxu0 0.0
        %2176 = vmatmul.mubr.f32.gmra.mrb[0].mxu0 %v1912
        %v2177 = vpop.f32.mrb[0].mxu0
        %v2178 = vadd.f32 %v1896, %v2177
        %v2179 = vpop.f32.mrb[0].mxu0
        %2180 = vmatprep.mubr.f32.mxu0 0.0
        %2181 = vmatmul.mubr.f32.gmra.mrb[0].mxu0 %v1915
        %v2182 = vpop.f32.mrb[0].mxu0
        %v2183 = vadd.f32 %v1896, %v2182
        %v2184 = vpop.f32.mrb[0].mxu0
        %2185 = vmatprep.mubr.f32.mxu0 0.0
        %2186 = vmatmul.mubr.f32.gmra.mrb[0].mxu0 %v1918
        %v2187 = vpop.f32.mrb[0].mxu0
        %v2188 = vadd.f32 %v1896, %v2187
        %v2189 = vpop.f32.mrb[0].mxu0
        %2190 = vmatprep.mubr.f32.mxu0 0.0
        %2191 = vmatmul.mubr.f32.gmra.mrb[0].mxu0 %v1921
        %v2192 = vpop.f32.mrb[0].mxu0
        %v2193 = vadd.f32 %v1896, %v2192
        %v2194 = vpop.f32.mrb[0].mxu0
        %2195 = vmatprep.mubr.f32.mxu0 0.0
        %2196 = vmatmul.mubr.f32.gmra.mrb[0].mxu0 %v1924
        %v2197 = vpop.f32.mrb[0].mxu0
        %v2198 = vadd.f32 %v1896, %v2197
        %v2199 = vpop.f32.mrb[0].mxu0
        %2200 = vmatprep.mubr.f32.mxu0 0.0
        %2201 = vmatmul.mubr.f32.gmra.mrb[0].mxu0 %v1927
        %v2202 = vpop.f32.mrb[0].mxu0
        %v2203 = vadd.f32 %v1896, %v2202
        %v2204 = vpop.f32.mrb[0].mxu0
        %2205 = vmatprep.mubr.f32.mxu0 0.0
        %2206 = vmatmul.mubr.f32.gmra.mrb[0].mxu0 %v1930
        %v2207 = vpop.f32.mrb[0].mxu0
        %v2208 = vadd.f32 %v1896, %v2207
        %v2209 = vpop.f32.mrb[0].mxu0
        %2210 = vmatprep.mubr.f32.mxu0 0.0
        %2211 = vmatmul.mubr.f32.gmra.mrb[0].mxu0 %v1933
        %v2212 = vpop.f32.mrb[0].mxu0
        %v2213 = vadd.f32 %v1896, %v2212
        %v2214 = vpop.f32.mrb[0].mxu0
        %2215 = vmatprep.mubr.f32.mxu0 0.0
        %2216 = vmatmul.mubr.f32.gmra.mrb[0].mxu0 %v1936
        %v2217 = vpop.f32.mrb[0].mxu0
        %v2218 = vadd.f32 %v1896, %v2217
        %v2219 = vpop.f32.mrb[0].mxu0
        %2220 = vmatprep.mubr.f32.mxu0 0.0
        %2221 = vmatmul.mubr.f32.gmra.mrb[0].mxu0 %v1939
        %v2222 = vpop.f32.mrb[0].mxu0
        %v2223 = vadd.f32 %v1896, %v2222
        %v2224 = vpop.f32.mrb[0].mxu0
        %2225 = vmatprep.mubr.f32.mxu0 0.0
        %2226 = vmatmul.mubr.f32.gmra.mrb[0].mxu0 %v1942
        %v2227 = vpop.f32.mrb[0].mxu0
        %v2228 = vadd.f32 %v1896, %v2227
        %v2229 = vpop.f32.mrb[0].mxu0
        %2230 = vmatprep.mubr.f32.mxu0 0.0
        %2231 = vmatmul.mubr.f32.gmra.mrb[0].mxu0 %v1945
        %v2232 = vpop.f32.mrb[0].mxu0
        %v2233 = vadd.f32 %v1896, %v2232
        %v2234 = vpop.f32.mrb[0].mxu0
        %2235 = vmatprep.mubr.f32.mxu0 0.0
        %2236 = vmatmul.mubr.f32.gmra.mrb[0].mxu0 %v1948
        %v2237 = vpop.f32.mrb[0].mxu0
        %v2238 = vadd.f32 %v1896, %v2237
        %v2239 = vpop.f32.mrb[0].mxu0
        %2240 = vmatprep.mubr.f32.mxu0 0.0
        %2241 = vmatmul.mubr.f32.gmra.mrb[0].mxu0 %v1951
        %v2242 = vpop.f32.mrb[0].mxu0
        %v2243 = vadd.f32 %v1896, %v2242
        %v2244 = vpop.f32.mrb[0].mxu0
        %2245 = vmatprep.mubr.f32.mxu0 0.0
        %2246 = vmatmul.mubr.f32.gmra.mrb[0].mxu0 %v1954
        %v2247 = vpop.f32.mrb[0].mxu0
        %v2248 = vadd.f32 %v1896, %v2247
        %v2249 = vpop.f32.mrb[0].mxu0
        %2250 = vmatprep.mubr.f32.mxu0 0.0
        %2251 = vmatmul.mubr.f32.gmra.mrb[0].mxu0 %v1957
        %v2252 = vpop.f32.mrb[0].mxu0
        %v2253 = vadd.f32 %v1896, %v2252
        %v2254 = vpop.f32.mrb[0].mxu0
        %2255 = vmatprep.mubr.f32.mxu0 0.0
        %2256 = vmatmul.mubr.f32.gmra.mrb[0].mxu0 %v1960
        %v2257 = vpop.f32.mrb[0].mxu0
        %v2258 = vadd.f32 %v1896, %v2257
        %v2259 = vpop.f32.mrb[0].mxu0
        %2260 = vmatprep.mubr.f32.mxu0 0.0
        %2261 = vmatmul.mubr.f32.gmra.mrb[0].mxu0 %v1963
        %v2262 = vpop.f32.mrb[0].mxu0
        %v2263 = vadd.f32 %v1896, %v2262
        %v2264 = vpop.f32.mrb[0].mxu0
        %2265 = vmatprep.mubr.f32.mxu0 0.0
        %2266 = vmatmul.mubr.f32.gmra.mrb[0].mxu0 %v1966
        %v2267 = vpop.f32.mrb[0].mxu0
        %v2268 = vadd.f32 %v1896, %v2267
        %v2269 = vpop.f32.mrb[0].mxu0
        %2270 = vmatprep.mubr.f32.mxu0 0.0
        %2271 = vmatmul.mubr.f32.gmra.mrb[0].mxu0 %v1969
        %v2272 = vpop.f32.mrb[0].mxu0
        %v2273 = vadd.f32 %v1896, %v2272
        %v2274 = vpop.f32.mrb[0].mxu0
        %2275 = vmatprep.mubr.f32.mxu0 0.0
        %2276 = vmatmul.mubr.f32.gmra.mrb[0].mxu0 %v1972
        %v2277 = vpop.f32.mrb[0].mxu0
        %v2278 = vadd.f32 %v1896, %v2277
        %v2279 = vpop.f32.mrb[0].mxu0
        %2280 = vmatprep.mubr.f32.mxu0 0.0
        %2281 = vmatmul.mubr.f32.gmra.mrb[0].mxu0 %v1975
        %v2282 = vpop.f32.mrb[0].mxu0
        %v2283 = vadd.f32 %v1896, %v2282
        %v2284 = vpop.f32.mrb[0].mxu0
        %2285 = vmatprep.mubr.f32.mxu0 0.0
        %2286 = vmatmul.mubr.f32.gmra.mrb[0].mxu0 %v1978
        %v2287 = vpop.f32.mrb[0].mxu0
        %v2288 = vadd.f32 %v1896, %v2287
        %v2289 = vpop.f32.mrb[0].mxu0
        %2290 = vmatprep.mubr.f32.mxu0 0.0
        %2291 = vmatmul.mubr.f32.gmra.mrb[0].mxu0 %v1981
        %v2292 = vpop.f32.mrb[0].mxu0
        %v2293 = vadd.f32 %v1896, %v2292
        %v2294 = vpop.f32.mrb[0].mxu0
        %2295 = vmatprep.mubr.f32.mxu0 0.0
        %2296 = vmatmul.mubr.f32.gmra.mrb[0].mxu0 %v1984
        %v2297 = vpop.f32.mrb[0].mxu0
        %v2298 = vadd.f32 %v1896, %v2297
        %v2299 = vpop.f32.mrb[0].mxu0
        %2300 = vmatprep.mubr.f32.mxu0 0.0
        %2301 = vmatmul.mubr.f32.gmra.mrb[0].mxu0 %v1987
        %v2302 = vpop.f32.mrb[0].mxu0
        %v2303 = vadd.f32 %v1896, %v2302
        %v2304 = vpop.f32.mrb[0].mxu0
        %2305 = vmatprep.mubr.f32.mxu0 0.0
        %2306 = vmatmul.mubr.f32.gmra.mrb[0].mxu0 %v1990
        %v2307 = vpop.f32.mrb[0].mxu0
        %v2308 = vadd.f32 %v1896, %v2307
        %v2309 = vpop.f32.mrb[0].mxu0
        %2310 = vmatprep.mubr.f32.mxu0 0.0
        %2311 = vmatmul.mubr.f32.gmra.mrb[0].mxu0 %v1993
        %v2312 = vpop.f32.mrb[0].mxu0
        %v2313 = vadd.f32 %v1896, %v2312
        %v2314 = vpop.f32.mrb[0].mxu0
        %2315 = vmatprep.mubr.f32.mxu0 0.0
        %2316 = vmatmul.mubr.f32.gmra.mrb[0].mxu0 %v1996
        %v2317 = vpop.f32.mrb[0].mxu0
        %v2318 = vadd.f32 %v1896, %v2317
        %v2319 = vpop.f32.mrb[0].mxu0
        %2320 = vmatprep.mubr.f32.mxu0 0.0
        %2321 = vmatmul.mubr.f32.gmra.mrb[0].mxu0 %v1999
        %v2322 = vpop.f32.mrb[0].mxu0
        %v2323 = vadd.f32 %v1896, %v2322
        %v2324 = vpop.f32.mrb[0].mxu0
        %2325 = vmatprep.mubr.f32.mxu0 0.0
        %2326 = vmatmul.mubr.f32.gmra.mrb[0].mxu0 %v2002
        %v2327 = vpop.f32.mrb[0].mxu0
        %v2328 = vadd.f32 %v1896, %v2327
        %v2329 = vpop.f32.mrb[0].mxu0
        %2330 = vmatprep.mubr.f32.mxu0 0.0
        %2331 = vmatmul.mubr.f32.gmra.mrb[0].mxu0 %v2005
        %v2332 = vpop.f32.mrb[0].mxu0
        %v2333 = vadd.f32 %v1896, %v2332
        %v2334 = vpop.f32.mrb[0].mxu0
        %2335 = vmatprep.mubr.f32.mxu0 0.0
        %2336 = vmatmul.mubr.f32.gmra.mrb[0].mxu0 %v2008
        %v2337 = vpop.f32.mrb[0].mxu0
        %v2338 = vadd.f32 %v1896, %v2337
        %v2339 = vpop.f32.mrb[0].mxu0
        %2340 = vmatprep.mubr.f32.mxu0 0.0
        %2341 = vmatmul.mubr.f32.gmra.mrb[0].mxu0 %v2011
        %v2342 = vpop.f32.mrb[0].mxu0
        %v2343 = vadd.f32 %v1896, %v2342
        %v2344 = vpop.f32.mrb[0].mxu0
        %2345 = vmatprep.mubr.f32.mxu0 0.0
        %2346 = vmatmul.mubr.f32.gmra.mrb[0].mxu0 %v2014
        %v2347 = vpop.f32.mrb[0].mxu0
        %v2348 = vadd.f32 %v1896, %v2347
        %v2349 = vpop.f32.mrb[0].mxu0
        %2350 = vmatprep.mubr.f32.mxu0 0.0
        %2351 = vmatmul.mubr.f32.gmra.mrb[0].mxu0 %v2017
        %v2352 = vpop.f32.mrb[0].mxu0
        %v2353 = vadd.f32 %v1896, %v2352
        %v2354 = vpop.f32.mrb[0].mxu0
        %2355 = vmatprep.mubr.f32.mxu0 0.0
        %2356 = vmatmul.mubr.f32.gmra.mrb[0].mxu0 %v2020
        %v2357 = vpop.f32.mrb[0].mxu0
        %v2358 = vadd.f32 %v1896, %v2357
        %v2359 = vpop.f32.mrb[0].mxu0
        %2360 = vmatprep.mubr.f32.mxu0 0.0
        %2361 = vmatmul.mubr.f32.gmra.mrb[0].mxu0 %v2023
        %v2362 = vpop.f32.mrb[0].mxu0
        %v2363 = vadd.f32 %v1896, %v2362
        %v2364 = vpop.f32.mrb[0].mxu0
        %2365 = vmatprep.mubr.f32.mxu0 0.0
        %2366 = vmatmul.mubr.f32.gmra.mrb[0].mxu0 %v2026
        %v2367 = vpop.f32.mrb[0].mxu0
        %v2368 = vadd.f32 %v1896, %v2367
        %v2369 = vpop.f32.mrb[0].mxu0
        %2370 = vmatprep.mubr.f32.mxu0 0.0
        %2371 = vmatmul.mubr.f32.gmra.mrb[0].mxu0 %v2029
        %v2372 = vpop.f32.mrb[0].mxu0
        %v2373 = vadd.f32 %v1896, %v2372
        %v2374 = vpop.f32.mrb[0].mxu0
        %2375 = vmatprep.mubr.f32.mxu0 0.0
        %2376 = vmatmul.mubr.f32.gmra.mrb[0].mxu0 %v2032
        %v2377 = vpop.f32.mrb[0].mxu0
        %v2378 = vadd.f32 %v1896, %v2377
        %v2379 = vpop.f32.mrb[0].mxu0
        %2380 = vmatprep.mubr.f32.mxu0 0.0
        %2381 = vmatmul.mubr.f32.gmra.mrb[0].mxu0 %v2035
        %v2382 = vpop.f32.mrb[0].mxu0
        %v2383 = vadd.f32 %v1896, %v2382
        %v2384 = vpop.f32.mrb[0].mxu0
        %2385 = vmatprep.mubr.f32.mxu0 0.0
        %2386 = vmatmul.mubr.f32.gmra.mrb[0].mxu0 %v2038
        %v2387 = vpop.f32.mrb[0].mxu0
        %v2388 = vadd.f32 %v1896, %v2387
        %v2389 = vpop.f32.mrb[0].mxu0
        %2390 = vmatprep.mubr.f32.mxu0 0.0
        %2391 = vmatmul.mubr.f32.gmra.mrb[0].mxu0 %v2041
        %v2392 = vpop.f32.mrb[0].mxu0
        %v2393 = vadd.f32 %v1896, %v2392
        %v2394 = vpop.f32.mrb[0].mxu0
        %2395 = vmatprep.mubr.f32.mxu0 0.0
        %2396 = vmatmul.mubr.f32.gmra.mrb[0].mxu0 %v2044
        %v2397 = vpop.f32.mrb[0].mxu0
        %v2398 = vadd.f32 %v1896, %v2397
        %v2399 = vpop.f32.mrb[0].mxu0
        %2400 = vmatprep.mubr.f32.mxu0 0.0
        %2401 = vmatmul.mubr.f32.gmra.mrb[0].mxu0 %v2047
        %v2402 = vpop.f32.mrb[0].mxu0
        %v2403 = vadd.f32 %v1896, %v2402
        %v2404 = vpop.f32.mrb[0].mxu0
        %2405 = vmatprep.mubr.f32.mxu0 0.0
        %2406 = vmatmul.mubr.f32.gmra.mrb[0].mxu0 %v2050
        %v2407 = vpop.f32.mrb[0].mxu0
        %v2408 = vadd.f32 %v1896, %v2407
        %v2409 = vpop.f32.mrb[0].mxu0
        %2410 = vmatprep.mubr.f32.mxu0 0.0
        %2411 = vmatmul.mubr.f32.gmra.mrb[0].mxu0 %v2053
        %v2412 = vpop.f32.mrb[0].mxu0
        %v2413 = vadd.f32 %v1896, %v2412
        %v2414 = vpop.f32.mrb[0].mxu0
        %2415 = vmatprep.mubr.f32.mxu0 0.0
        %2416 = vmatmul.mubr.f32.gmra.mrb[0].mxu0 %v2056
        %v2417 = vpop.f32.mrb[0].mxu0
        %v2418 = vadd.f32 %v1896, %v2417
        %v2419 = vpop.f32.mrb[0].mxu0
        %2420 = vmatprep.mubr.f32.mxu0 0.0
        %2421 = vmatmul.mubr.f32.gmra.mrb[0].mxu0 %v2059
        %v2422 = vpop.f32.mrb[0].mxu0
        %v2423 = vadd.f32 %v1896, %v2422
        %v2424 = vpop.f32.mrb[0].mxu0
        %2425 = vmatprep.mubr.f32.mxu0 0.0
        %2426 = vmatmul.mubr.f32.gmra.mrb[0].mxu0 %v2062
        %v2427 = vpop.f32.mrb[0].mxu0
        %v2428 = vadd.f32 %v1896, %v2427
        %v2429 = vpop.f32.mrb[0].mxu0
        %2430 = vmatprep.mubr.f32.mxu0 0.0
        %2431 = vmatmul.mubr.f32.gmra.mrb[0].mxu0 %v2065
        %v2432 = vpop.f32.mrb[0].mxu0
        %v2433 = vadd.f32 %v1896, %v2432
        %v2434 = vpop.f32.mrb[0].mxu0
        %2435 = vmatprep.mubr.f32.mxu0 0.0
        %2436 = vmatmul.mubr.f32.gmra.mrb[0].mxu0 %v2068
        %v2437 = vpop.f32.mrb[0].mxu0
        %v2438 = vadd.f32 %v1896, %v2437
        %v2439 = vpop.f32.mrb[0].mxu0
        %2440 = vmatprep.mubr.f32.mxu0 0.0
        %2441 = vmatmul.mubr.f32.gmra.mrb[0].mxu0 %v2071
        %v2442 = vpop.f32.mrb[0].mxu0
        %v2443 = vadd.f32 %v1896, %v2442
        %v2444 = vpop.f32.mrb[0].mxu0
        %2445 = vmatprep.mubr.f32.mxu0 0.0
        %2446 = vmatmul.mubr.f32.gmra.mrb[0].mxu0 %v2074
        %v2447 = vpop.f32.mrb[0].mxu0
        %v2448 = vadd.f32 %v1896, %v2447
        %v2449 = vpop.f32.mrb[0].mxu0
        %2450 = vmatprep.mubr.f32.mxu0 0.0
        %2451 = vmatmul.mubr.f32.gmra.mrb[0].mxu0 %v2077
        %v2452 = vpop.f32.mrb[0].mxu0
        %v2453 = vadd.f32 %v1896, %v2452
        %v2454 = vpop.f32.mrb[0].mxu0
        %2455 = vmatprep.mubr.f32.mxu0 0.0
        %2456 = vmatmul.mubr.f32.gmra.mrb[0].mxu0 %v2080
        %v2457 = vpop.f32.mrb[0].mxu0
        %v2458 = vadd.f32 %v1896, %v2457
        %v2459 = vpop.f32.mrb[0].mxu0
        %2460 = vmatprep.mubr.f32.mxu0 0.0
        %2461 = vmatmul.mubr.f32.gmra.mrb[0].mxu0 %v2083
        %v2462 = vpop.f32.mrb[0].mxu0
        %v2463 = vadd.f32 %v1896, %v2462
        %v2464 = vpop.f32.mrb[0].mxu0
        %2465 = vmatprep.mubr.f32.mxu0 0.0
        %2466 = vmatmul.mubr.f32.gmra.mrb[0].mxu0 %v2086
        %v2467 = vpop.f32.mrb[0].mxu0
        %v2468 = vadd.f32 %v1896, %v2467
        %v2469 = vpop.f32.mrb[0].mxu0
        %2470 = vmatprep.mubr.f32.mxu0 0.0
        %2471 = vmatmul.mubr.f32.gmra.mrb[0].mxu0 %v2089
        %v2472 = vpop.f32.mrb[0].mxu0
        %v2473 = vadd.f32 %v1896, %v2472
        %v2474 = vpop.f32.mrb[0].mxu0
        %2475 = vdwg.mxu0
        %v2476 = vmax.f32 %v2158, 0.0
        %v2477 = vmax.f32 %v2163, 0.0
        %v2478 = vmax.f32 %v2168, 0.0
        %v2479 = vmax.f32 %v2173, 0.0
        %v2480 = vmax.f32 %v2178, 0.0
        %v2481 = vmax.f32 %v2183, 0.0
        %v2482 = vmax.f32 %v2188, 0.0
        %v2483 = vmax.f32 %v2193, 0.0
        %v2484 = vmax.f32 %v2198, 0.0
        %v2485 = vmax.f32 %v2203, 0.0
        %v2486 = vmax.f32 %v2208, 0.0
        %v2487 = vmax.f32 %v2213, 0.0
        %v2488 = vmax.f32 %v2218, 0.0
        %v2489 = vmax.f32 %v2223, 0.0
        %v2490 = vmax.f32 %v2228, 0.0
        %v2491 = vmax.f32 %v2233, 0.0
        %v2492 = vmax.f32 %v2238, 0.0
        %v2493 = vmax.f32 %v2243, 0.0
        %v2494 = vmax.f32 %v2248, 0.0
        %v2495 = vmax.f32 %v2253, 0.0
        %v2496 = vmax.f32 %v2258, 0.0
        %v2497 = vmax.f32 %v2263, 0.0
        %v2498 = vmax.f32 %v2268, 0.0
        %v2499 = vmax.f32 %v2273, 0.0
        %v2500 = vmax.f32 %v2278, 0.0
        %v2501 = vmax.f32 %v2283, 0.0
        %v2502 = vmax.f32 %v2288, 0.0
        %v2503 = vmax.f32 %v2293, 0.0
        %v2504 = vmax.f32 %v2298, 0.0
        %v2505 = vmax.f32 %v2303, 0.0
        %v2506 = vmax.f32 %v2308, 0.0
        %v2507 = vmax.f32 %v2313, 0.0
        %v2508 = vmax.f32 %v2318, 0.0
        %v2509 = vmax.f32 %v2323, 0.0
        %v2510 = vmax.f32 %v2328, 0.0
        %v2511 = vmax.f32 %v2333, 0.0
        %v2512 = vmax.f32 %v2338, 0.0
        %v2513 = vmax.f32 %v2343, 0.0
        %v2514 = vmax.f32 %v2348, 0.0
        %v2515 = vmax.f32 %v2353, 0.0
        %v2516 = vmax.f32 %v2358, 0.0
        %v2517 = vmax.f32 %v2363, 0.0
        %v2518 = vmax.f32 %v2368, 0.0
        %v2519 = vmax.f32 %v2373, 0.0
        %v2520 = vmax.f32 %v2378, 0.0
        %v2521 = vmax.f32 %v2383, 0.0
        %v2522 = vmax.f32 %v2388, 0.0
        %v2523 = vmax.f32 %v2393, 0.0
        %v2524 = vmax.f32 %v2398, 0.0
        %v2525 = vmax.f32 %v2403, 0.0
        %v2526 = vmax.f32 %v2408, 0.0
        %v2527 = vmax.f32 %v2413, 0.0
        %v2528 = vmax.f32 %v2418, 0.0
        %v2529 = vmax.f32 %v2423, 0.0
        %v2530 = vmax.f32 %v2428, 0.0
        %v2531 = vmax.f32 %v2433, 0.0
        %v2532 = vmax.f32 %v2438, 0.0
        %v2533 = vmax.f32 %v2443, 0.0
        %v2534 = vmax.f32 %v2448, 0.0
        %v2535 = vmax.f32 %v2453, 0.0
        %v2536 = vmax.f32 %v2458, 0.0
        %v2537 = vmax.f32 %v2463, 0.0
        %v2538 = vmax.f32 %v2468, 0.0
        %v2539 = vmax.f32 %v2473, 0.0
        %v2540 = vld [vmem:[%s5] sm:$0xff]
        %v2541 = vld [vmem:[%s5 + $0x8] sm:$0xff]
        %v2542 = vld [vmem:[%s5 + $0x10] sm:$0xff]
        %v2543 = vld [vmem:[%s5 + $0x18] sm:$0xff]
        %v2544 = vld [vmem:[%s5 + $0x20] sm:$0xff]
        %v2545 = vld [vmem:[%s5 + $0x28] sm:$0xff]
        %v2546 = vld [vmem:[%s5 + $0x30] sm:$0xff]
        %v2547 = vld [vmem:[%s5 + $0x38] sm:$0xff]
        %v2548 = vld [vmem:[%s5 + $0x40] sm:$0xff]
        %v2549 = vld [vmem:[%s5 + $0x48] sm:$0xff]
        %v2550 = vld [vmem:[%s5 + $0x50] sm:$0xff]
        %v2551 = vld [vmem:[%s5 + $0x58] sm:$0xff]
        %v2552 = vld [vmem:[%s5 + $0x60] sm:$0xff]
        %v2553 = vld [vmem:[%s5 + $0x68] sm:$0xff]
        %v2554 = vld [vmem:[%s5 + $0x70] sm:$0xff]
        %v2555 = vld [vmem:[%s5 + $0x78] sm:$0xff]
        %v2556 = vld [vmem:[%s6] sm:$0x1]
        %v2558 = vlaneseq
        %v2559 = vshrl.u32 %v2558, 7
        %v2560 = vsub.s32 0, %v2559
        %v2561 = vrot.slane %v2556, %v2560
        %2563 = vmatprep.subr.mxu0 0.0
        %2564 = vmatpush1.msra.mxu0 %v2540
        %2565 = vmatprep.subr.mxu0 0.0
        %2566 = vmatpush1.msra.mxu0 %v2541
        %2567 = vmatprep.subr.mxu0 0.0
        %2568 = vmatpush1.msra.mxu0 %v2542
        %2569 = vmatprep.subr.mxu0 0.0
        %2570 = vmatpush1.msra.mxu0 %v2543
        %2571 = vmatprep.subr.mxu0 0.0
        %2572 = vmatpush1.msra.mxu0 %v2544
        %2573 = vmatprep.subr.mxu0 0.0
        %2574 = vmatpush1.msra.mxu0 %v2545
        %2575 = vmatprep.subr.mxu0 0.0
        %2576 = vmatpush1.msra.mxu0 %v2546
        %2577 = vmatprep.subr.mxu0 0.0
        %2578 = vmatpush1.msra.mxu0 %v2547
        %2579 = vmatprep.subr.mxu0 0.0
        %2580 = vmatpush1.msra.mxu0 %v2548
        %2581 = vmatprep.subr.mxu0 0.0
        %2582 = vmatpush1.msra.mxu0 %v2549
        %2583 = vmatprep.subr.mxu0 0.0
        %2584 = vmatpush1.msra.mxu0 %v2550
        %2585 = vmatprep.subr.mxu0 0.0
        %2586 = vmatpush1.msra.mxu0 %v2551
        %2587 = vmatprep.subr.mxu0 0.0
        %2588 = vmatpush1.msra.mxu0 %v2552
        %2589 = vmatprep.subr.mxu0 0.0
        %2590 = vmatpush1.msra.mxu0 %v2553
        %2591 = vmatprep.subr.mxu0 0.0
        %2592 = vmatpush1.msra.mxu0 %v2554
        %2593 = vmatprep.subr.mxu0 0.0
        %2594 = vmatpush1.msra.mxu0 %v2555
        %2595 = vmatprep.subr.mxu0 0.0
        %2596 = vmatpush1.msra.mxu0 0.0
        %2597 = vmatprep.subr.mxu0 0.0
        %2598 = vmatpush1.msra.mxu0 0.0
        %2599 = vmatprep.subr.mxu0 0.0
        %2600 = vmatpush1.msra.mxu0 0.0
        %2601 = vmatprep.subr.mxu0 0.0
        %2602 = vmatpush1.msra.mxu0 0.0
        %2603 = vmatprep.subr.mxu0 0.0
        %2604 = vmatpush1.msra.mxu0 0.0
        %2605 = vmatprep.subr.mxu0 0.0
        %2606 = vmatpush1.msra.mxu0 0.0
        %2607 = vmatprep.subr.mxu0 0.0
        %2608 = vmatpush1.msra.mxu0 0.0
        %2609 = vmatprep.subr.mxu0 0.0
        %2610 = vmatpush1.msra.mxu0 0.0
        %2611 = vmatprep.subr.mxu0 0.0
        %2612 = vmatpush1.msra.mxu0 0.0
        %2613 = vmatprep.subr.mxu0 0.0
        %2614 = vmatpush1.msra.mxu0 0.0
        %2615 = vmatprep.subr.mxu0 0.0
        %2616 = vmatpush1.msra.mxu0 0.0
        %2617 = vmatprep.subr.mxu0 0.0
        %2618 = vmatpush1.msra.mxu0 0.0
        %2619 = vmatprep.subr.mxu0 0.0
        %2620 = vmatpush1.msra.mxu0 0.0
        %2621 = vmatprep.subr.mxu0 0.0
        %2622 = vmatpush1.msra.mxu0 0.0
        %2623 = vmatprep.subr.mxu0 0.0
        %2624 = vmatpush1.msra.mxu0 0.0
        %2625 = vmatprep.subr.mxu0 0.0
        %2626 = vmatpush1.msra.mxu0 0.0
        %2627 = vmatprep.mubr.f32.mxu0 0.0
        %2628 = vmatmul.mubr.f32.gmra.mrb[0].mxu0 %v2476
        %v2629 = vpop.f32.mrb[0].mxu0
        %v2630 = vadd.f32 %v2561, %v2629
        %v2631 = vpop.f32.mrb[0].mxu0
        %2632 = vmatprep.mubr.f32.mxu0 0.0
        %2633 = vmatmul.mubr.f32.gmra.mrb[0].mxu0 %v2477
        %v2634 = vpop.f32.mrb[0].mxu0
        %v2635 = vadd.f32 %v2561, %v2634
        %v2636 = vpop.f32.mrb[0].mxu0
        %2637 = vmatprep.mubr.f32.mxu0 0.0
        %2638 = vmatmul.mubr.f32.gmra.mrb[0].mxu0 %v2478
        %v2639 = vpop.f32.mrb[0].mxu0
        %v2640 = vadd.f32 %v2561, %v2639
        %v2641 = vpop.f32.mrb[0].mxu0
        %2642 = vmatprep.mubr.f32.mxu0 0.0
        %2643 = vmatmul.mubr.f32.gmra.mrb[0].mxu0 %v2479
        %v2644 = vpop.f32.mrb[0].mxu0
        %v2645 = vadd.f32 %v2561, %v2644
        %v2646 = vpop.f32.mrb[0].mxu0
        %2647 = vmatprep.mubr.f32.mxu0 0.0
        %2648 = vmatmul.mubr.f32.gmra.mrb[0].mxu0 %v2480
        %v2649 = vpop.f32.mrb[0].mxu0
        %v2650 = vadd.f32 %v2561, %v2649
        %v2651 = vpop.f32.mrb[0].mxu0
        %2652 = vmatprep.mubr.f32.mxu0 0.0
        %2653 = vmatmul.mubr.f32.gmra.mrb[0].mxu0 %v2481
        %v2654 = vpop.f32.mrb[0].mxu0
        %v2655 = vadd.f32 %v2561, %v2654
        %v2656 = vpop.f32.mrb[0].mxu0
        %2657 = vmatprep.mubr.f32.mxu0 0.0
        %2658 = vmatmul.mubr.f32.gmra.mrb[0].mxu0 %v2482
        %v2659 = vpop.f32.mrb[0].mxu0
        %v2660 = vadd.f32 %v2561, %v2659
        %v2661 = vpop.f32.mrb[0].mxu0
        %2662 = vmatprep.mubr.f32.mxu0 0.0
        %2663 = vmatmul.mubr.f32.gmra.mrb[0].mxu0 %v2483
        %v2664 = vpop.f32.mrb[0].mxu0
        %v2665 = vadd.f32 %v2561, %v2664
        %v2666 = vpop.f32.mrb[0].mxu0
        %2667 = vmatprep.mubr.f32.mxu0 0.0
        %2668 = vmatmul.mubr.f32.gmra.mrb[0].mxu0 %v2484
        %v2669 = vpop.f32.mrb[0].mxu0
        %v2670 = vadd.f32 %v2561, %v2669
        %v2671 = vpop.f32.mrb[0].mxu0
        %2672 = vmatprep.mubr.f32.mxu0 0.0
        %2673 = vmatmul.mubr.f32.gmra.mrb[0].mxu0 %v2485
        %v2674 = vpop.f32.mrb[0].mxu0
        %v2675 = vadd.f32 %v2561, %v2674
        %v2676 = vpop.f32.mrb[0].mxu0
        %2677 = vmatprep.mubr.f32.mxu0 0.0
        %2678 = vmatmul.mubr.f32.gmra.mrb[0].mxu0 %v2486
        %v2679 = vpop.f32.mrb[0].mxu0
        %v2680 = vadd.f32 %v2561, %v2679
        %v2681 = vpop.f32.mrb[0].mxu0
        %2682 = vmatprep.mubr.f32.mxu0 0.0
        %2683 = vmatmul.mubr.f32.gmra.mrb[0].mxu0 %v2487
        %v2684 = vpop.f32.mrb[0].mxu0
        %v2685 = vadd.f32 %v2561, %v2684
        %v2686 = vpop.f32.mrb[0].mxu0
        %2687 = vmatprep.mubr.f32.mxu0 0.0
        %2688 = vmatmul.mubr.f32.gmra.mrb[0].mxu0 %v2488
        %v2689 = vpop.f32.mrb[0].mxu0
        %v2690 = vadd.f32 %v2561, %v2689
        %v2691 = vpop.f32.mrb[0].mxu0
        %2692 = vmatprep.mubr.f32.mxu0 0.0
        %2693 = vmatmul.mubr.f32.gmra.mrb[0].mxu0 %v2489
        %v2694 = vpop.f32.mrb[0].mxu0
        %v2695 = vadd.f32 %v2561, %v2694
        %v2696 = vpop.f32.mrb[0].mxu0
        %2697 = vmatprep.mubr.f32.mxu0 0.0
        %2698 = vmatmul.mubr.f32.gmra.mrb[0].mxu0 %v2490
        %v2699 = vpop.f32.mrb[0].mxu0
        %v2700 = vadd.f32 %v2561, %v2699
        %v2701 = vpop.f32.mrb[0].mxu0
        %2702 = vmatprep.mubr.f32.mxu0 0.0
        %2703 = vmatmul.mubr.f32.gmra.mrb[0].mxu0 %v2491
        %v2704 = vpop.f32.mrb[0].mxu0
        %v2705 = vadd.f32 %v2561, %v2704
        %v2706 = vpop.f32.mrb[0].mxu0
        %2707 = vmatprep.mubr.f32.mxu0 0.0
        %2708 = vmatmul.mubr.f32.gmra.mrb[0].mxu0 %v2492
        %v2709 = vpop.f32.mrb[0].mxu0
        %v2710 = vadd.f32 %v2561, %v2709
        %v2711 = vpop.f32.mrb[0].mxu0
        %2712 = vmatprep.mubr.f32.mxu0 0.0
        %2713 = vmatmul.mubr.f32.gmra.mrb[0].mxu0 %v2493
        %v2714 = vpop.f32.mrb[0].mxu0
        %v2715 = vadd.f32 %v2561, %v2714
        %v2716 = vpop.f32.mrb[0].mxu0
        %2717 = vmatprep.mubr.f32.mxu0 0.0
        %2718 = vmatmul.mubr.f32.gmra.mrb[0].mxu0 %v2494
        %v2719 = vpop.f32.mrb[0].mxu0
        %v2720 = vadd.f32 %v2561, %v2719
        %v2721 = vpop.f32.mrb[0].mxu0
        %2722 = vmatprep.mubr.f32.mxu0 0.0
        %2723 = vmatmul.mubr.f32.gmra.mrb[0].mxu0 %v2495
        %v2724 = vpop.f32.mrb[0].mxu0
        %v2725 = vadd.f32 %v2561, %v2724
        %v2726 = vpop.f32.mrb[0].mxu0
        %2727 = vmatprep.mubr.f32.mxu0 0.0
        %2728 = vmatmul.mubr.f32.gmra.mrb[0].mxu0 %v2496
        %v2729 = vpop.f32.mrb[0].mxu0
        %v2730 = vadd.f32 %v2561, %v2729
        %v2731 = vpop.f32.mrb[0].mxu0
        %2732 = vmatprep.mubr.f32.mxu0 0.0
        %2733 = vmatmul.mubr.f32.gmra.mrb[0].mxu0 %v2497
        %v2734 = vpop.f32.mrb[0].mxu0
        %v2735 = vadd.f32 %v2561, %v2734
        %v2736 = vpop.f32.mrb[0].mxu0
        %2737 = vmatprep.mubr.f32.mxu0 0.0
        %2738 = vmatmul.mubr.f32.gmra.mrb[0].mxu0 %v2498
        %v2739 = vpop.f32.mrb[0].mxu0
        %v2740 = vadd.f32 %v2561, %v2739
        %v2741 = vpop.f32.mrb[0].mxu0
        %2742 = vmatprep.mubr.f32.mxu0 0.0
        %2743 = vmatmul.mubr.f32.gmra.mrb[0].mxu0 %v2499
        %v2744 = vpop.f32.mrb[0].mxu0
        %v2745 = vadd.f32 %v2561, %v2744
        %v2746 = vpop.f32.mrb[0].mxu0
        %2747 = vmatprep.mubr.f32.mxu0 0.0
        %2748 = vmatmul.mubr.f32.gmra.mrb[0].mxu0 %v2500
        %v2749 = vpop.f32.mrb[0].mxu0
        %v2750 = vadd.f32 %v2561, %v2749
        %v2751 = vpop.f32.mrb[0].mxu0
        %2752 = vmatprep.mubr.f32.mxu0 0.0
        %2753 = vmatmul.mubr.f32.gmra.mrb[0].mxu0 %v2501
        %v2754 = vpop.f32.mrb[0].mxu0
        %v2755 = vadd.f32 %v2561, %v2754
        %v2756 = vpop.f32.mrb[0].mxu0
        %2757 = vmatprep.mubr.f32.mxu0 0.0
        %2758 = vmatmul.mubr.f32.gmra.mrb[0].mxu0 %v2502
        %v2759 = vpop.f32.mrb[0].mxu0
        %v2760 = vadd.f32 %v2561, %v2759
        %v2761 = vpop.f32.mrb[0].mxu0
        %2762 = vmatprep.mubr.f32.mxu0 0.0
        %2763 = vmatmul.mubr.f32.gmra.mrb[0].mxu0 %v2503
        %v2764 = vpop.f32.mrb[0].mxu0
        %v2765 = vadd.f32 %v2561, %v2764
        %v2766 = vpop.f32.mrb[0].mxu0
        %2767 = vmatprep.mubr.f32.mxu0 0.0
        %2768 = vmatmul.mubr.f32.gmra.mrb[0].mxu0 %v2504
        %v2769 = vpop.f32.mrb[0].mxu0
        %v2770 = vadd.f32 %v2561, %v2769
        %v2771 = vpop.f32.mrb[0].mxu0
        %2772 = vmatprep.mubr.f32.mxu0 0.0
        %2773 = vmatmul.mubr.f32.gmra.mrb[0].mxu0 %v2505
        %v2774 = vpop.f32.mrb[0].mxu0
        %v2775 = vadd.f32 %v2561, %v2774
        %v2776 = vpop.f32.mrb[0].mxu0
        %2777 = vmatprep.mubr.f32.mxu0 0.0
        %2778 = vmatmul.mubr.f32.gmra.mrb[0].mxu0 %v2506
        %v2779 = vpop.f32.mrb[0].mxu0
        %v2780 = vadd.f32 %v2561, %v2779
        %v2781 = vpop.f32.mrb[0].mxu0
        %2782 = vmatprep.mubr.f32.mxu0 0.0
        %2783 = vmatmul.mubr.f32.gmra.mrb[0].mxu0 %v2507
        %v2784 = vpop.f32.mrb[0].mxu0
        %v2785 = vadd.f32 %v2561, %v2784
        %v2786 = vpop.f32.mrb[0].mxu0
        %2787 = vmatprep.mubr.f32.mxu0 0.0
        %2788 = vmatmul.mubr.f32.gmra.mrb[0].mxu0 %v2508
        %v2789 = vpop.f32.mrb[0].mxu0
        %v2790 = vadd.f32 %v2561, %v2789
        %v2791 = vpop.f32.mrb[0].mxu0
        %2792 = vmatprep.mubr.f32.mxu0 0.0
        %2793 = vmatmul.mubr.f32.gmra.mrb[0].mxu0 %v2509
        %v2794 = vpop.f32.mrb[0].mxu0
        %v2795 = vadd.f32 %v2561, %v2794
        %v2796 = vpop.f32.mrb[0].mxu0
        %2797 = vmatprep.mubr.f32.mxu0 0.0
        %2798 = vmatmul.mubr.f32.gmra.mrb[0].mxu0 %v2510
        %v2799 = vpop.f32.mrb[0].mxu0
        %v2800 = vadd.f32 %v2561, %v2799
        %v2801 = vpop.f32.mrb[0].mxu0
        %2802 = vmatprep.mubr.f32.mxu0 0.0
        %2803 = vmatmul.mubr.f32.gmra.mrb[0].mxu0 %v2511
        %v2804 = vpop.f32.mrb[0].mxu0
        %v2805 = vadd.f32 %v2561, %v2804
        %v2806 = vpop.f32.mrb[0].mxu0
        %2807 = vmatprep.mubr.f32.mxu0 0.0
        %2808 = vmatmul.mubr.f32.gmra.mrb[0].mxu0 %v2512
        %v2809 = vpop.f32.mrb[0].mxu0
        %v2810 = vadd.f32 %v2561, %v2809
        %v2811 = vpop.f32.mrb[0].mxu0
        %2812 = vmatprep.mubr.f32.mxu0 0.0
        %2813 = vmatmul.mubr.f32.gmra.mrb[0].mxu0 %v2513
        %v2814 = vpop.f32.mrb[0].mxu0
        %v2815 = vadd.f32 %v2561, %v2814
        %v2816 = vpop.f32.mrb[0].mxu0
        %2817 = vmatprep.mubr.f32.mxu0 0.0
        %2818 = vmatmul.mubr.f32.gmra.mrb[0].mxu0 %v2514
        %v2819 = vpop.f32.mrb[0].mxu0
        %v2820 = vadd.f32 %v2561, %v2819
        %v2821 = vpop.f32.mrb[0].mxu0
        %2822 = vmatprep.mubr.f32.mxu0 0.0
        %2823 = vmatmul.mubr.f32.gmra.mrb[0].mxu0 %v2515
        %v2824 = vpop.f32.mrb[0].mxu0
        %v2825 = vadd.f32 %v2561, %v2824
        %v2826 = vpop.f32.mrb[0].mxu0
        %2827 = vmatprep.mubr.f32.mxu0 0.0
        %2828 = vmatmul.mubr.f32.gmra.mrb[0].mxu0 %v2516
        %v2829 = vpop.f32.mrb[0].mxu0
        %v2830 = vadd.f32 %v2561, %v2829
        %v2831 = vpop.f32.mrb[0].mxu0
        %2832 = vmatprep.mubr.f32.mxu0 0.0
        %2833 = vmatmul.mubr.f32.gmra.mrb[0].mxu0 %v2517
        %v2834 = vpop.f32.mrb[0].mxu0
        %v2835 = vadd.f32 %v2561, %v2834
        %v2836 = vpop.f32.mrb[0].mxu0
        %2837 = vmatprep.mubr.f32.mxu0 0.0
        %2838 = vmatmul.mubr.f32.gmra.mrb[0].mxu0 %v2518
        %v2839 = vpop.f32.mrb[0].mxu0
        %v2840 = vadd.f32 %v2561, %v2839
        %v2841 = vpop.f32.mrb[0].mxu0
        %2842 = vmatprep.mubr.f32.mxu0 0.0
        %2843 = vmatmul.mubr.f32.gmra.mrb[0].mxu0 %v2519
        %v2844 = vpop.f32.mrb[0].mxu0
        %v2845 = vadd.f32 %v2561, %v2844
        %v2846 = vpop.f32.mrb[0].mxu0
        %2847 = vmatprep.mubr.f32.mxu0 0.0
        %2848 = vmatmul.mubr.f32.gmra.mrb[0].mxu0 %v2520
        %v2849 = vpop.f32.mrb[0].mxu0
        %v2850 = vadd.f32 %v2561, %v2849
        %v2851 = vpop.f32.mrb[0].mxu0
        %2852 = vmatprep.mubr.f32.mxu0 0.0
        %2853 = vmatmul.mubr.f32.gmra.mrb[0].mxu0 %v2521
        %v2854 = vpop.f32.mrb[0].mxu0
        %v2855 = vadd.f32 %v2561, %v2854
        %v2856 = vpop.f32.mrb[0].mxu0
        %2857 = vmatprep.mubr.f32.mxu0 0.0
        %2858 = vmatmul.mubr.f32.gmra.mrb[0].mxu0 %v2522
        %v2859 = vpop.f32.mrb[0].mxu0
        %v2860 = vadd.f32 %v2561, %v2859
        %v2861 = vpop.f32.mrb[0].mxu0
        %2862 = vmatprep.mubr.f32.mxu0 0.0
        %2863 = vmatmul.mubr.f32.gmra.mrb[0].mxu0 %v2523
        %v2864 = vpop.f32.mrb[0].mxu0
        %v2865 = vadd.f32 %v2561, %v2864
        %v2866 = vpop.f32.mrb[0].mxu0
        %2867 = vmatprep.mubr.f32.mxu0 0.0
        %2868 = vmatmul.mubr.f32.gmra.mrb[0].mxu0 %v2524
        %v2869 = vpop.f32.mrb[0].mxu0
        %v2870 = vadd.f32 %v2561, %v2869
        %v2871 = vpop.f32.mrb[0].mxu0
        %2872 = vmatprep.mubr.f32.mxu0 0.0
        %2873 = vmatmul.mubr.f32.gmra.mrb[0].mxu0 %v2525
        %v2874 = vpop.f32.mrb[0].mxu0
        %v2875 = vadd.f32 %v2561, %v2874
        %v2876 = vpop.f32.mrb[0].mxu0
        %2877 = vmatprep.mubr.f32.mxu0 0.0
        %2878 = vmatmul.mubr.f32.gmra.mrb[0].mxu0 %v2526
        %v2879 = vpop.f32.mrb[0].mxu0
        %v2880 = vadd.f32 %v2561, %v2879
        %v2881 = vpop.f32.mrb[0].mxu0
        %2882 = vmatprep.mubr.f32.mxu0 0.0
        %2883 = vmatmul.mubr.f32.gmra.mrb[0].mxu0 %v2527
        %v2884 = vpop.f32.mrb[0].mxu0
        %v2885 = vadd.f32 %v2561, %v2884
        %v2886 = vpop.f32.mrb[0].mxu0
        %2887 = vmatprep.mubr.f32.mxu0 0.0
        %2888 = vmatmul.mubr.f32.gmra.mrb[0].mxu0 %v2528
        %v2889 = vpop.f32.mrb[0].mxu0
        %v2890 = vadd.f32 %v2561, %v2889
        %v2891 = vpop.f32.mrb[0].mxu0
        %2892 = vmatprep.mubr.f32.mxu0 0.0
        %2893 = vmatmul.mubr.f32.gmra.mrb[0].mxu0 %v2529
        %v2894 = vpop.f32.mrb[0].mxu0
        %v2895 = vadd.f32 %v2561, %v2894
        %v2896 = vpop.f32.mrb[0].mxu0
        %2897 = vmatprep.mubr.f32.mxu0 0.0
        %2898 = vmatmul.mubr.f32.gmra.mrb[0].mxu0 %v2530
        %v2899 = vpop.f32.mrb[0].mxu0
        %v2900 = vadd.f32 %v2561, %v2899
        %v2901 = vpop.f32.mrb[0].mxu0
        %2902 = vmatprep.mubr.f32.mxu0 0.0
        %2903 = vmatmul.mubr.f32.gmra.mrb[0].mxu0 %v2531
        %v2904 = vpop.f32.mrb[0].mxu0
        %v2905 = vadd.f32 %v2561, %v2904
        %v2906 = vpop.f32.mrb[0].mxu0
        %2907 = vmatprep.mubr.f32.mxu0 0.0
        %2908 = vmatmul.mubr.f32.gmra.mrb[0].mxu0 %v2532
        %v2909 = vpop.f32.mrb[0].mxu0
        %v2910 = vadd.f32 %v2561, %v2909
        %v2911 = vpop.f32.mrb[0].mxu0
        %2912 = vmatprep.mubr.f32.mxu0 0.0
        %2913 = vmatmul.mubr.f32.gmra.mrb[0].mxu0 %v2533
        %v2914 = vpop.f32.mrb[0].mxu0
        %v2915 = vadd.f32 %v2561, %v2914
        %v2916 = vpop.f32.mrb[0].mxu0
        %2917 = vmatprep.mubr.f32.mxu0 0.0
        %2918 = vmatmul.mubr.f32.gmra.mrb[0].mxu0 %v2534
        %v2919 = vpop.f32.mrb[0].mxu0
        %v2920 = vadd.f32 %v2561, %v2919
        %v2921 = vpop.f32.mrb[0].mxu0
        %2922 = vmatprep.mubr.f32.mxu0 0.0
        %2923 = vmatmul.mubr.f32.gmra.mrb[0].mxu0 %v2535
        %v2924 = vpop.f32.mrb[0].mxu0
        %v2925 = vadd.f32 %v2561, %v2924
        %v2926 = vpop.f32.mrb[0].mxu0
        %2927 = vmatprep.mubr.f32.mxu0 0.0
        %2928 = vmatmul.mubr.f32.gmra.mrb[0].mxu0 %v2536
        %v2929 = vpop.f32.mrb[0].mxu0
        %v2930 = vadd.f32 %v2561, %v2929
        %v2931 = vpop.f32.mrb[0].mxu0
        %2932 = vmatprep.mubr.f32.mxu0 0.0
        %2933 = vmatmul.mubr.f32.gmra.mrb[0].mxu0 %v2537
        %v2934 = vpop.f32.mrb[0].mxu0
        %v2935 = vadd.f32 %v2561, %v2934
        %v2936 = vpop.f32.mrb[0].mxu0
        %2937 = vmatprep.mubr.f32.mxu0 0.0
        %2938 = vmatmul.mubr.f32.gmra.mrb[0].mxu0 %v2538
        %v2939 = vpop.f32.mrb[0].mxu0
        %v2940 = vadd.f32 %v2561, %v2939
        %v2941 = vpop.f32.mrb[0].mxu0
        %2942 = vmatprep.mubr.f32.mxu0 0.0
        %2943 = vmatmul.mubr.f32.gmra.mrb[0].mxu0 %v2539
        %v2944 = vpop.f32.mrb[0].mxu0
        %v2945 = vadd.f32 %v2561, %v2944
        %v2946 = vpop.f32.mrb[0].mxu0
        %2947 = vdwg.mxu0
        %vm2948 = vcmask 130048
        %2949 = vst.msk [vmem:[%s357] sm:$0xff] %vm2948, %v2630
        %2950 = vst.msk [vmem:[%s357 + $0x8] sm:$0xff] %vm2948, %v2635
        %2951 = vst.msk [vmem:[%s357 + $0x10] sm:$0xff] %vm2948, %v2640
        %2952 = vst.msk [vmem:[%s357 + $0x18] sm:$0xff] %vm2948, %v2645
        %2953 = vst.msk [vmem:[%s357 + $0x20] sm:$0xff] %vm2948, %v2650
        %2954 = vst.msk [vmem:[%s357 + $0x28] sm:$0xff] %vm2948, %v2655
        %2955 = vst.msk [vmem:[%s357 + $0x30] sm:$0xff] %vm2948, %v2660
        %2956 = vst.msk [vmem:[%s357 + $0x38] sm:$0xff] %vm2948, %v2665
        %2957 = vst.msk [vmem:[%s357 + $0x40] sm:$0xff] %vm2948, %v2670
        %2958 = vst.msk [vmem:[%s357 + $0x48] sm:$0xff] %vm2948, %v2675
        %2959 = vst.msk [vmem:[%s357 + $0x50] sm:$0xff] %vm2948, %v2680
        %2960 = vst.msk [vmem:[%s357 + $0x58] sm:$0xff] %vm2948, %v2685
        %2961 = vst.msk [vmem:[%s357 + $0x60] sm:$0xff] %vm2948, %v2690
        %2962 = vst.msk [vmem:[%s357 + $0x68] sm:$0xff] %vm2948, %v2695
        %2963 = vst.msk [vmem:[%s357 + $0x70] sm:$0xff] %vm2948, %v2700
        %2964 = vst.msk [vmem:[%s357 + $0x78] sm:$0xff] %vm2948, %v2705
        %2965 = vst.msk [vmem:[%s357 + $0x80] sm:$0xff] %vm2948, %v2710
        %2966 = vst.msk [vmem:[%s357 + $0x88] sm:$0xff] %vm2948, %v2715
        %2967 = vst.msk [vmem:[%s357 + $0x90] sm:$0xff] %vm2948, %v2720
        %2968 = vst.msk [vmem:[%s357 + $0x98] sm:$0xff] %vm2948, %v2725
        %2969 = vst.msk [vmem:[%s357 + $0xa0] sm:$0xff] %vm2948, %v2730
        %2970 = vst.msk [vmem:[%s357 + $0xa8] sm:$0xff] %vm2948, %v2735
        %2971 = vst.msk [vmem:[%s357 + $0xb0] sm:$0xff] %vm2948, %v2740
        %2972 = vst.msk [vmem:[%s357 + $0xb8] sm:$0xff] %vm2948, %v2745
        %2973 = vst.msk [vmem:[%s357 + $0xc0] sm:$0xff] %vm2948, %v2750
        %2974 = vst.msk [vmem:[%s357 + $0xc8] sm:$0xff] %vm2948, %v2755
        %2975 = vst.msk [vmem:[%s357 + $0xd0] sm:$0xff] %vm2948, %v2760
        %2976 = vst.msk [vmem:[%s357 + $0xd8] sm:$0xff] %vm2948, %v2765
        %2977 = vst.msk [vmem:[%s357 + $0xe0] sm:$0xff] %vm2948, %v2770
        %2978 = vst.msk [vmem:[%s357 + $0xe8] sm:$0xff] %vm2948, %v2775
        %2979 = vst.msk [vmem:[%s357 + $0xf0] sm:$0xff] %vm2948, %v2780
        %2980 = vst.msk [vmem:[%s357 + $0xf8] sm:$0xff] %vm2948, %v2785
        %2981 = vst.msk [vmem:[%s357 + $0x100] sm:$0xff] %vm2948, %v2790
        %2982 = vst.msk [vmem:[%s357 + $0x108] sm:$0xff] %vm2948, %v2795
        %2983 = vst.msk [vmem:[%s357 + $0x110] sm:$0xff] %vm2948, %v2800
        %2984 = vst.msk [vmem:[%s357 + $0x118] sm:$0xff] %vm2948, %v2805
        %2985 = vst.msk [vmem:[%s357 + $0x120] sm:$0xff] %vm2948, %v2810
        %2986 = vst.msk [vmem:[%s357 + $0x128] sm:$0xff] %vm2948, %v2815
        %2987 = vst.msk [vmem:[%s357 + $0x130] sm:$0xff] %vm2948, %v2820
        %2988 = vst.msk [vmem:[%s357 + $0x138] sm:$0xff] %vm2948, %v2825
        %2989 = vst.msk [vmem:[%s357 + $0x140] sm:$0xff] %vm2948, %v2830
        %2990 = vst.msk [vmem:[%s357 + $0x148] sm:$0xff] %vm2948, %v2835
        %2991 = vst.msk [vmem:[%s357 + $0x150] sm:$0xff] %vm2948, %v2840
        %2992 = vst.msk [vmem:[%s357 + $0x158] sm:$0xff] %vm2948, %v2845
        %2993 = vst.msk [vmem:[%s357 + $0x160] sm:$0xff] %vm2948, %v2850
        %2994 = vst.msk [vmem:[%s357 + $0x168] sm:$0xff] %vm2948, %v2855
        %2995 = vst.msk [vmem:[%s357 + $0x170] sm:$0xff] %vm2948, %v2860
        %2996 = vst.msk [vmem:[%s357 + $0x178] sm:$0xff] %vm2948, %v2865
        %2997 = vst.msk [vmem:[%s357 + $0x180] sm:$0xff] %vm2948, %v2870
        %2998 = vst.msk [vmem:[%s357 + $0x188] sm:$0xff] %vm2948, %v2875
        %2999 = vst.msk [vmem:[%s357 + $0x190] sm:$0xff] %vm2948, %v2880
        %3000 = vst.msk [vmem:[%s357 + $0x198] sm:$0xff] %vm2948, %v2885
        %3001 = vst.msk [vmem:[%s357 + $0x1a0] sm:$0xff] %vm2948, %v2890
        %3002 = vst.msk [vmem:[%s357 + $0x1a8] sm:$0xff] %vm2948, %v2895
        %3003 = vst.msk [vmem:[%s357 + $0x1b0] sm:$0xff] %vm2948, %v2900
        %3004 = vst.msk [vmem:[%s357 + $0x1b8] sm:$0xff] %vm2948, %v2905
        %3005 = vst.msk [vmem:[%s357 + $0x1c0] sm:$0xff] %vm2948, %v2910
        %3006 = vst.msk [vmem:[%s357 + $0x1c8] sm:$0xff] %vm2948, %v2915
        %3007 = vst.msk [vmem:[%s357 + $0x1d0] sm:$0xff] %vm2948, %v2920
        %3008 = vst.msk [vmem:[%s357 + $0x1d8] sm:$0xff] %vm2948, %v2925
        %3009 = vst.msk [vmem:[%s357 + $0x1e0] sm:$0xff] %vm2948, %v2930
        %3010 = vst.msk [vmem:[%s357 + $0x1e8] sm:$0xff] %vm2948, %v2935
        %3011 = vst.msk [vmem:[%s357 + $0x1f0] sm:$0xff] %vm2948, %v2940
        %3012 = vst.msk [vmem:[%s357 + $0x1f8] sm:$0xff] %vm2948, %v2945
        %s3013 = sand.u32 %s199, 1
        %s3014 = scalar_lea.sflag [#allocation3], %s3013
        %s3015 = sand.u32 %s199, 1
        %s3016 = smul.addr %s3015, 256
        %s3017 = scalar_lea.vmem [#allocation2], %s3016
        %s3018 = smul.u32 64, %s28
        %p3019 = scmp.lt.s32.totalorder %s27, 1
        %s3020 = scalar_select %p3019, %s27, 1
        %p3021 = scmp.lt.s32.totalorder %s3018, 127
        %s3022 = scalar_select %p3021, %s3018, 127
        %s3023 = smul.addr %s3020, 128
        %s3024 = sadd.s32 %s3022, %s3023
        %s3025 = smul.addr %s3024, 8
        %s3026 = scalar_lea.vmem %s8, %s3025
        // Predicated region
        $region49: #{tpu_custom_call.1} parent=47 // pred_check
          %p3027 = pneg %p209
        $region50: #{tpu_custom_call.1} parent=47 // pred_check_branch
          %3029 = sbr.rel (%p3027) target = $region52
        $region51: #{tpu_custom_call.1} parent=47 // pred_region
          %s3030 = smul.u32 4, %s28
          %s3032 = ssub.s32 4096, 4096
          %3033 = vsyncadd %s3014, %s3032
          %s3034 = smul.addr %s27, 64
          %s3035 = sadd.s32 %s3030, %s3034
          %s3036 = smul.addr %s3035, 128
          %s3037 = scalar_lea.hbm %s7, %s3036
          %s3038 = sshll.u32 %s3017, 4
          %s3039 = int_to_ptr.vmem [resolvable:$true] %s3038
          %3044 = dma.vmem_to_hbm [thread:$0]  %s3039, 4096, %s3037, %s3014, 512, 1024, 32
        $region52: #{tpu_custom_call.1} parent=47 // pred_fallthru
          _
        // Predicated region
        $region53: #{tpu_custom_call.1} parent=47 // pred_check
          %p3045 = pneg %p237
        $region54: #{tpu_custom_call.1} parent=47 // pred_check_branch
          %3047 = sbr.rel (%p3045) target = $region56
        $region55: #{tpu_custom_call.1} parent=47 // pred_region
          %s3048 = smul.u32 64, %s28
        $region56: #{tpu_custom_call.1} parent=47 // pred_fallthru
          _
      $region48: #{tpu_custom_call.1} parent=5 // pred_fallthru
        _
      %p3049 = scmp.le.s32.totalorder 2, %s18
      // Predicated region
      $region57: #{tpu_custom_call.1} parent=5 // pred_check
        %p3050 = pneg %p3049
      $region58: #{tpu_custom_call.1} parent=5 // pred_check_branch
        %3052 = sbr.rel (%p3050) target = $region60
      $region59: #{tpu_custom_call.1} parent=5 // pred_region
        %s3053 = ssub.s32 %s18, 2
        // Predicated region
        $region61: #{tpu_custom_call.1} parent=59 // pred_check
          %p3054 = pneg %p215
        $region62: #{tpu_custom_call.1} parent=59 // pred_check_branch
          %3056 = sbr.rel (%p3054) target = $region64
        $region63: #{tpu_custom_call.1} parent=59 // pred_region
          %s3057 = sand.u32 %s200, 1
          %s3058 = scalar_lea.sflag [#allocation3], %s3057
          %s3059 = sand.u32 %s200, 1
          %s3060 = smul.addr %s3059, 256
          %s3061 = scalar_lea.vmem [#allocation2], %s3060
          %3062 = dma.done %s3058, 4096
        $region64: #{tpu_custom_call.1} parent=59 // pred_fallthru
          _
        // Predicated region
        $region65: #{tpu_custom_call.1} parent=59 // pred_check
          %p3063 = pneg %p243
        $region66: #{tpu_custom_call.1} parent=59 // pred_check_branch
          %3065 = sbr.rel (%p3063) target = $region68
        $region67: #{tpu_custom_call.1} parent=59 // pred_region
          %s3066 = smul.u32 64, %s30
          %p3067 = scmp.lt.s32.totalorder %s29, 1
          %s3068 = scalar_select %p3067, %s29, 1
          %p3069 = scmp.lt.s32.totalorder %s3066, 127
          %s3070 = scalar_select %p3069, %s3066, 127
          %s3071 = smul.addr %s3068, 128
          %s3072 = sadd.s32 %s3070, %s3071
          %s3073 = smul.addr %s3072, 8
          %s3074 = scalar_lea.vmem %s8, %s3073
        $region68: #{tpu_custom_call.1} parent=59 // pred_fallthru
          _
      $region60: #{tpu_custom_call.1} parent=5 // pred_fallthru
        _
    $region6: #{tpu_custom_call.1} parent=1 // loop_footer
      %s22 = sadd.s32 1, %s18
    $region7: #{tpu_custom_call.1} parent=1 // loop_footer_branch
      %17 = sbr.rel target = $region3
    $region8: #{tpu_custom_call.1} parent=1 // loop_exit
      _
    %3075 = vsyncpa [#allocation3], 1
    %s3076 = scalar_lea.sflag [#allocation3], 1
    %3077 = vsyncpa %s3076, 1

</llo_original>
